<compile_context>
chip_gen: v5e
topology: v5e:2x2
jax: 0.10.0
libtpu: 0.0.40
codegen_flags: <defaults>
</compile_context>

<pallas_src>
import jax
import jax.numpy as jnp
from jax.experimental import pallas as pl
from jax.experimental.pallas import tpu as pltpu

B = 16            # graphs per super-batch
N = 8             # nodes per graph
BN = B * N        # 128 batched nodes per super-batch -> lane axis
F_IN = 9
F_PAD = 16        # sublane-padded input feature rows (16 % 8 == 0)
OUT_ROWS = 8      # sublane-padded output rows (rows 0:2 valid)
LANES = 128

# ------------------- SMEM parameter slab layout (1-D, f32[70]) ---------------
#   W1 (9,4) row-major  -> [ 0, 36)     b1 (4,) -> [36, 40)
#   W2 (4,4) row-major  -> [40, 56)     b2 (4,) -> [56, 60)
#   W3 (4,2) row-major  -> [60, 68)     b3 (2,) -> [68, 70)
W1_OFF, B1_OFF = 0, 36
W2_OFF, B2_OFF = 40, 56
W3_OFF, B3_OFF = 60, 68
N_PARAMS = 70


# ----------------------------- Pallas kernel --------------------------------
def gcn3_kernel(p_ref, at_ref, xt_ref, ot_ref):
    """One 128-node super-batch, feature-major.

    p_ref  : (70,)        f32 SMEM  packed weights/biases
    at_ref : (128, 128)   f32 VMEM  A_hat^T (block-diagonal, normalized)
    xt_ref : (16, 128)    f32 VMEM  x^T (rows 0:9 valid, rest zero)
    ot_ref : (8, 128)     f32 VMEM  out^T (rows 0:2 valid, rest zero)
    """

    def gcn_layer(h_t, fin, fout, w_off, b_off, activate):
        # ---- feature transform on the VPU: xw^T[j,:] = sum_k W[k,j] * h^T[k,:]
        rows = []
        for j in range(fout):
            acc = p_ref[w_off + j] * h_t[0:1, :]
            for k in range(1, fin):
                acc = acc + p_ref[w_off + k * fout + j] * h_t[k:k + 1, :]
            rows.append(acc)
        pad = OUT_ROWS - fout
        if pad:
            rows.append(jnp.zeros((pad, LANES), jnp.float32))
        xw_t = jnp.concatenate(rows, axis=0)                  # [8, 128]

        # ---- node aggregation on the MXU: (XW)^T @ A_hat^T  -> (A_hat @ XW)^T
        agg_t = jnp.dot(xw_t, at_ref[...],
                        preferred_element_type=jnp.float32,
                        precision=jax.lax.Precision.HIGHEST)  # [8, 128]

        # ---- bias + optional tanh, row by row (scalar bias from SMEM)
        out_rows = []
        for j in range(fout):
            r = agg_t[j:j + 1, :] + p_ref[b_off + j]
            out_rows.append(jnp.tanh(r) if activate else r)
        if pad:
            out_rows.append(jnp.zeros((pad, LANES), jnp.float32))
        return jnp.concatenate(out_rows, axis=0)              # [8, 128]

    x_t = xt_ref[...]                                         # [16, 128]
    h = gcn_layer(x_t, F_IN, 4, W1_OFF, B1_OFF, True)
    h = gcn_layer(h, 4, 4, W2_OFF, B2_OFF, True)
    ot_ref[...] = gcn_layer(h, 4, 2, W3_OFF, B3_OFF, False)   # rows >= 2 are 0


# ------------------------------ wrapper --------------------------------------
def gcn3_forward(at_blocks, xt_blocks, params_vec):
    """at_blocks: (G,128,128) A_hat^T per super-batch; xt_blocks: (G,16,128)."""
    g_blocks = at_blocks.shape[0]

    # Advisory cost estimate so XLA can schedule around this small call.
    ft_flops = 2 * BN * (F_IN * 4 + 4 * 4 + 4 * 2)
    agg_flops = 3 * 2 * BN * BN * OUT_ROWS
    bias_flops = BN * (4 + 4 + 2)
    flops = g_blocks * (ft_flops + agg_flops + bias_flops)
    transcendentals = g_blocks * BN * 8
    bytes_accessed = (g_blocks * 4 * (BN * BN + F_PAD * BN + OUT_ROWS * BN)
                      + 4 * N_PARAMS)

    out_t = pl.pallas_call(
        gcn3_kernel,
        out_shape=jax.ShapeDtypeStruct((g_blocks, OUT_ROWS, LANES), jnp.float32),
        grid=(g_blocks,),
        in_specs=[
            pl.BlockSpec(memory_space=pltpu.MemorySpace.SMEM),        # params
            pl.BlockSpec((None, LANES, LANES), lambda g: (g, 0, 0)),  # A_hat^T
            pl.BlockSpec((None, F_PAD, LANES), lambda g: (g, 0, 0)),  # x^T
        ],
        out_specs=pl.BlockSpec((None, OUT_ROWS, LANES), lambda g: (g, 0, 0)),
        compiler_params=pltpu.CompilerParams(
            dimension_semantics=("parallel",)),
        cost_estimate=pl.CostEstimate(
            flops=flops,
            transcendentals=transcendentals,
            bytes_accessed=bytes_accessed,
        ),
    )(params_vec, at_blocks, xt_blocks)

    # feature-major (G, 8, 128) -> node-major (G*128, 2)
    return out_t[:, :2, :].transpose(0, 2, 1).reshape(g_blocks * LANES, 2)


# ------------------------------- glue (JAX) ----------------------------------
def build_norm_adj(edge_index, num_nodes):
    """D^{-1/2} (A + I) D^{-1/2} with A[dst, src] = 1 (source-to-target flow)."""
    src, dst = edge_index[0], edge_index[1]
    loop = jnp.arange(num_nodes, dtype=src.dtype)
    src = jnp.concatenate([src, loop])
    dst = jnp.concatenate([dst, loop])
    adj = jnp.zeros((num_nodes, num_nodes), jnp.float32).at[dst, src].add(1.0)
    deg = adj.sum(axis=1)
    dinv = jnp.where(deg > 0, 1.0 / jnp.sqrt(deg), 0.0)
    return dinv[:, None] * adj * dinv[None, :]


def init_params(key):
    """Deterministic glorot-style init matching GCNConv(9,4),(4,4),(4,2)."""
    dims = [(F_IN, 4), (4, 4), (4, 2)]
    params = []
    for i, (fin, fout) in enumerate(dims):
        kw = jax.random.fold_in(key, i)
        limit = jnp.sqrt(6.0 / (fin + fout))
        w = jax.random.uniform(kw, (fin, fout), jnp.float32, -limit, limit)
        b = jnp.zeros((fout,), jnp.float32)
        params.append((w, b))
    return params


def pack_params(params):
    """Pack the 3x(W,b) into one 1-D f32[70] SMEM slab (scalar operands)."""
    (w1, b1), (w2, b2), (w3, b3) = params
    vec = jnp.concatenate([w1.reshape(-1), b1,
                           w2.reshape(-1), b2,
                           w3.reshape(-1), b3]).astype(jnp.float32)
    assert vec.shape == (N_PARAMS,)
    return vec


def pack_features(x, g_blocks):
    """(G*128, 9) node-major -> (G, 16, 128) feature-major, rows 9..15 zero."""
    xb = x.reshape(g_blocks, LANES, F_IN)
    xt = jnp.zeros((g_blocks, F_PAD, LANES), jnp.float32)
    return xt.at[:, :F_IN, :].set(jnp.transpose(xb, (0, 2, 1)))


def gcn3_reference(a_hat, x, params):
    h = x
    for i, (w, b) in enumerate(params):
        hw = jnp.dot(h, w, precision=jax.lax.Precision.HIGHEST)
        h = jnp.dot(a_hat, hw, precision=jax.lax.Precision.HIGHEST) + b[None, :]
        if i < len(params) - 1:
            h = jnp.tanh(h)
    return h


# --------------------------------- main ---------------------------------------
if __name__ == "__main__":
    key = jax.random.PRNGKey(0)
    kx, kp = jax.random.split(key)

    G = 4                              # super-batches -> 4 * 16 graphs = 64 graphs
    total_nodes = G * BN               # 512 batched nodes

    # batched node features: (G*128, 9)
    x = jax.random.normal(kx, (total_nodes, F_IN), jnp.float32)

    # small deterministic undirected graph on 8 nodes (both directions listed),
    # replicated for the 16 graphs of one super-batch with node-index offsets
    # (PyG-style batching -> block-diagonal adjacency, no cross-graph edges).
    base_src = jnp.array([0, 1, 1, 2, 2, 3, 3, 4, 4, 5, 5, 6, 6, 7, 7, 0, 0, 4],
                         dtype=jnp.int32)
    base_dst = jnp.array([1, 0, 2, 1, 3, 2, 4, 3, 5, 4, 6, 5, 7, 6, 0, 7, 4, 0],
                         dtype=jnp.int32)
    src = jnp.concatenate([base_src + g * N for g in range(B)])
    dst = jnp.concatenate([base_dst + g * N for g in range(B)])
    edge_index = jnp.stack([src, dst], axis=0)          # [2, B*E]

    a_hat = build_norm_adj(edge_index, BN)              # (128, 128) block-diag
    # Pass A_hat^T (correct for directed graphs too); same topology per block.
    at_blocks = jnp.tile(a_hat.T[None], (G, 1, 1))      # (G, 128, 128)
    xt_blocks = pack_features(x, G)                     # (G, 16, 128)

    params = init_params(kp)
    params_vec = pack_params(params)

    out = gcn3_forward(at_blocks, xt_blocks, params_vec)
    out = jax.block_until_ready(out)

    # reference, super-batch by super-batch (same block-diagonal A_hat)
    x_blocks = x.reshape(G, BN, F_IN)
    ref = jnp.concatenate(
        [gcn3_reference(a_hat, x_blocks[g], params) for g in range(G)], axis=0)

    assert out.shape == (total_nodes, 2)
    assert jnp.allclose(out, ref, rtol=1e-3, atol=1e-3)

    # per-graph view: [G*B, N, 2]
    _ = out.reshape(G * B, N, 2)

    print("KERNEL_OK")
</pallas_src>

<mosaic_0001>
module attributes {stable_mosaic.version = 11 : i64} {
  func.func @gcn3_kernel(%arg0: i32, %arg1: memref<70xf32, #tpu.memory_space<smem>>, %arg2: memref<1x128x128xf32, #tpu.memory_space<vmem>>, %arg3: memref<1x16x128xf32, #tpu.memory_space<vmem>>, %arg4: memref<1x8x128xf32, #tpu.memory_space<vmem>>) attributes {dimension_semantics = [#tpu.dimension_semantics<parallel>], iteration_bounds = array<i64: 4>, scalar_prefetch = 0 : i64, scratch_operands = 0 : i64, tpu.core_type = #tpu.core_type<tc>, window_params = [{transform_indices = @transform_0, window_bounds = array<i64: 70>}, {transform_indices = @transform_1, window_bounds = array<i64: 1, 128, 128>}, {transform_indices = @transform_2, window_bounds = array<i64: 1, 16, 128>}, {transform_indices = @transform_3, window_bounds = array<i64: 1, 8, 128>}]} {
    %c0 = arith.constant 0 : index
    %c0_0 = arith.constant 0 : index
    %c0_1 = arith.constant 0 : index
    %0 = vector.load %arg3[%c0, %c0_0, %c0_1] : memref<1x16x128xf32, #tpu.memory_space<vmem>>, vector<1x16x128xf32>
    %1 = vector.shape_cast %0 : vector<1x16x128xf32> to vector<16x128xf32>
    %c0_2 = arith.constant 0 : index
    %2 = memref.load %arg1[%c0_2] : memref<70xf32, #tpu.memory_space<smem>>
    %3 = vector.extract_strided_slice %1 {offsets = [0, 0], sizes = [1, 128], strides = [1, 1]} : vector<16x128xf32> to vector<1x128xf32>
    %4 = vector.broadcast %2 : f32 to vector<1x128xf32>
    %5 = arith.mulf %4, %3 : vector<1x128xf32>
    %c4 = arith.constant 4 : index
    %6 = memref.load %arg1[%c4] : memref<70xf32, #tpu.memory_space<smem>>
    %7 = vector.extract_strided_slice %1 {offsets = [1, 0], sizes = [1, 128], strides = [1, 1]} : vector<16x128xf32> to vector<1x128xf32>
    %8 = vector.broadcast %6 : f32 to vector<1x128xf32>
    %9 = arith.mulf %8, %7 : vector<1x128xf32>
    %10 = arith.addf %5, %9 : vector<1x128xf32>
    %c8 = arith.constant 8 : index
    %11 = memref.load %arg1[%c8] : memref<70xf32, #tpu.memory_space<smem>>
    %12 = vector.extract_strided_slice %1 {offsets = [2, 0], sizes = [1, 128], strides = [1, 1]} : vector<16x128xf32> to vector<1x128xf32>
    %13 = vector.broadcast %11 : f32 to vector<1x128xf32>
    %14 = arith.mulf %13, %12 : vector<1x128xf32>
    %15 = arith.addf %10, %14 : vector<1x128xf32>
    %c12 = arith.constant 12 : index
    %16 = memref.load %arg1[%c12] : memref<70xf32, #tpu.memory_space<smem>>
    %17 = vector.extract_strided_slice %1 {offsets = [3, 0], sizes = [1, 128], strides = [1, 1]} : vector<16x128xf32> to vector<1x128xf32>
    %18 = vector.broadcast %16 : f32 to vector<1x128xf32>
    %19 = arith.mulf %18, %17 : vector<1x128xf32>
    %20 = arith.addf %15, %19 : vector<1x128xf32>
    %c16 = arith.constant 16 : index
    %21 = memref.load %arg1[%c16] : memref<70xf32, #tpu.memory_space<smem>>
    %22 = vector.extract_strided_slice %1 {offsets = [4, 0], sizes = [1, 128], strides = [1, 1]} : vector<16x128xf32> to vector<1x128xf32>
    %23 = vector.broadcast %21 : f32 to vector<1x128xf32>
    %24 = arith.mulf %23, %22 : vector<1x128xf32>
    %25 = arith.addf %20, %24 : vector<1x128xf32>
    %c20 = arith.constant 20 : index
    %26 = memref.load %arg1[%c20] : memref<70xf32, #tpu.memory_space<smem>>
    %27 = vector.extract_strided_slice %1 {offsets = [5, 0], sizes = [1, 128], strides = [1, 1]} : vector<16x128xf32> to vector<1x128xf32>
    %28 = vector.broadcast %26 : f32 to vector<1x128xf32>
    %29 = arith.mulf %28, %27 : vector<1x128xf32>
    %30 = arith.addf %25, %29 : vector<1x128xf32>
    %c24 = arith.constant 24 : index
    %31 = memref.load %arg1[%c24] : memref<70xf32, #tpu.memory_space<smem>>
    %32 = vector.extract_strided_slice %1 {offsets = [6, 0], sizes = [1, 128], strides = [1, 1]} : vector<16x128xf32> to vector<1x128xf32>
    %33 = vector.broadcast %31 : f32 to vector<1x128xf32>
    %34 = arith.mulf %33, %32 : vector<1x128xf32>
    %35 = arith.addf %30, %34 : vector<1x128xf32>
    %c28 = arith.constant 28 : index
    %36 = memref.load %arg1[%c28] : memref<70xf32, #tpu.memory_space<smem>>
    %37 = vector.extract_strided_slice %1 {offsets = [7, 0], sizes = [1, 128], strides = [1, 1]} : vector<16x128xf32> to vector<1x128xf32>
    %38 = vector.broadcast %36 : f32 to vector<1x128xf32>
    %39 = arith.mulf %38, %37 : vector<1x128xf32>
    %40 = arith.addf %35, %39 : vector<1x128xf32>
    %c32 = arith.constant 32 : index
    %41 = memref.load %arg1[%c32] : memref<70xf32, #tpu.memory_space<smem>>
    %42 = vector.extract_strided_slice %1 {offsets = [8, 0], sizes = [1, 128], strides = [1, 1]} : vector<16x128xf32> to vector<1x128xf32>
    %43 = vector.broadcast %41 : f32 to vector<1x128xf32>
    %44 = arith.mulf %43, %42 : vector<1x128xf32>
    %45 = arith.addf %40, %44 : vector<1x128xf32>
    %c1 = arith.constant 1 : index
    %46 = memref.load %arg1[%c1] : memref<70xf32, #tpu.memory_space<smem>>
    %47 = vector.extract_strided_slice %1 {offsets = [0, 0], sizes = [1, 128], strides = [1, 1]} : vector<16x128xf32> to vector<1x128xf32>
    %48 = vector.broadcast %46 : f32 to vector<1x128xf32>
    %49 = arith.mulf %48, %47 : vector<1x128xf32>
    %c5 = arith.constant 5 : index
    %50 = memref.load %arg1[%c5] : memref<70xf32, #tpu.memory_space<smem>>
    %51 = vector.extract_strided_slice %1 {offsets = [1, 0], sizes = [1, 128], strides = [1, 1]} : vector<16x128xf32> to vector<1x128xf32>
    %52 = vector.broadcast %50 : f32 to vector<1x128xf32>
    %53 = arith.mulf %52, %51 : vector<1x128xf32>
    %54 = arith.addf %49, %53 : vector<1x128xf32>
    %c9 = arith.constant 9 : index
    %55 = memref.load %arg1[%c9] : memref<70xf32, #tpu.memory_space<smem>>
    %56 = vector.extract_strided_slice %1 {offsets = [2, 0], sizes = [1, 128], strides = [1, 1]} : vector<16x128xf32> to vector<1x128xf32>
    %57 = vector.broadcast %55 : f32 to vector<1x128xf32>
    %58 = arith.mulf %57, %56 : vector<1x128xf32>
    %59 = arith.addf %54, %58 : vector<1x128xf32>
    %c13 = arith.constant 13 : index
    %60 = memref.load %arg1[%c13] : memref<70xf32, #tpu.memory_space<smem>>
    %61 = vector.extract_strided_slice %1 {offsets = [3, 0], sizes = [1, 128], strides = [1, 1]} : vector<16x128xf32> to vector<1x128xf32>
    %62 = vector.broadcast %60 : f32 to vector<1x128xf32>
    %63 = arith.mulf %62, %61 : vector<1x128xf32>
    %64 = arith.addf %59, %63 : vector<1x128xf32>
    %c17 = arith.constant 17 : index
    %65 = memref.load %arg1[%c17] : memref<70xf32, #tpu.memory_space<smem>>
    %66 = vector.extract_strided_slice %1 {offsets = [4, 0], sizes = [1, 128], strides = [1, 1]} : vector<16x128xf32> to vector<1x128xf32>
    %67 = vector.broadcast %65 : f32 to vector<1x128xf32>
    %68 = arith.mulf %67, %66 : vector<1x128xf32>
    %69 = arith.addf %64, %68 : vector<1x128xf32>
    %c21 = arith.constant 21 : index
    %70 = memref.load %arg1[%c21] : memref<70xf32, #tpu.memory_space<smem>>
    %71 = vector.extract_strided_slice %1 {offsets = [5, 0], sizes = [1, 128], strides = [1, 1]} : vector<16x128xf32> to vector<1x128xf32>
    %72 = vector.broadcast %70 : f32 to vector<1x128xf32>
    %73 = arith.mulf %72, %71 : vector<1x128xf32>
    %74 = arith.addf %69, %73 : vector<1x128xf32>
    %c25 = arith.constant 25 : index
    %75 = memref.load %arg1[%c25] : memref<70xf32, #tpu.memory_space<smem>>
    %76 = vector.extract_strided_slice %1 {offsets = [6, 0], sizes = [1, 128], strides = [1, 1]} : vector<16x128xf32> to vector<1x128xf32>
    %77 = vector.broadcast %75 : f32 to vector<1x128xf32>
    %78 = arith.mulf %77, %76 : vector<1x128xf32>
    %79 = arith.addf %74, %78 : vector<1x128xf32>
    %c29 = arith.constant 29 : index
    %80 = memref.load %arg1[%c29] : memref<70xf32, #tpu.memory_space<smem>>
    %81 = vector.extract_strided_slice %1 {offsets = [7, 0], sizes = [1, 128], strides = [1, 1]} : vector<16x128xf32> to vector<1x128xf32>
    %82 = vector.broadcast %80 : f32 to vector<1x128xf32>
    %83 = arith.mulf %82, %81 : vector<1x128xf32>
    %84 = arith.addf %79, %83 : vector<1x128xf32>
    %c33 = arith.constant 33 : index
    %85 = memref.load %arg1[%c33] : memref<70xf32, #tpu.memory_space<smem>>
    %86 = vector.extract_strided_slice %1 {offsets = [8, 0], sizes = [1, 128], strides = [1, 1]} : vector<16x128xf32> to vector<1x128xf32>
    %87 = vector.broadcast %85 : f32 to vector<1x128xf32>
    %88 = arith.mulf %87, %86 : vector<1x128xf32>
    %89 = arith.addf %84, %88 : vector<1x128xf32>
    %c2 = arith.constant 2 : index
    %90 = memref.load %arg1[%c2] : memref<70xf32, #tpu.memory_space<smem>>
    %91 = vector.extract_strided_slice %1 {offsets = [0, 0], sizes = [1, 128], strides = [1, 1]} : vector<16x128xf32> to vector<1x128xf32>
    %92 = vector.broadcast %90 : f32 to vector<1x128xf32>
    %93 = arith.mulf %92, %91 : vector<1x128xf32>
    %c6 = arith.constant 6 : index
    %94 = memref.load %arg1[%c6] : memref<70xf32, #tpu.memory_space<smem>>
    %95 = vector.extract_strided_slice %1 {offsets = [1, 0], sizes = [1, 128], strides = [1, 1]} : vector<16x128xf32> to vector<1x128xf32>
    %96 = vector.broadcast %94 : f32 to vector<1x128xf32>
    %97 = arith.mulf %96, %95 : vector<1x128xf32>
    %98 = arith.addf %93, %97 : vector<1x128xf32>
    %c10 = arith.constant 10 : index
    %99 = memref.load %arg1[%c10] : memref<70xf32, #tpu.memory_space<smem>>
    %100 = vector.extract_strided_slice %1 {offsets = [2, 0], sizes = [1, 128], strides = [1, 1]} : vector<16x128xf32> to vector<1x128xf32>
    %101 = vector.broadcast %99 : f32 to vector<1x128xf32>
    %102 = arith.mulf %101, %100 : vector<1x128xf32>
    %103 = arith.addf %98, %102 : vector<1x128xf32>
    %c14 = arith.constant 14 : index
    %104 = memref.load %arg1[%c14] : memref<70xf32, #tpu.memory_space<smem>>
    %105 = vector.extract_strided_slice %1 {offsets = [3, 0], sizes = [1, 128], strides = [1, 1]} : vector<16x128xf32> to vector<1x128xf32>
    %106 = vector.broadcast %104 : f32 to vector<1x128xf32>
    %107 = arith.mulf %106, %105 : vector<1x128xf32>
    %108 = arith.addf %103, %107 : vector<1x128xf32>
    %c18 = arith.constant 18 : index
    %109 = memref.load %arg1[%c18] : memref<70xf32, #tpu.memory_space<smem>>
    %110 = vector.extract_strided_slice %1 {offsets = [4, 0], sizes = [1, 128], strides = [1, 1]} : vector<16x128xf32> to vector<1x128xf32>
    %111 = vector.broadcast %109 : f32 to vector<1x128xf32>
    %112 = arith.mulf %111, %110 : vector<1x128xf32>
    %113 = arith.addf %108, %112 : vector<1x128xf32>
    %c22 = arith.constant 22 : index
    %114 = memref.load %arg1[%c22] : memref<70xf32, #tpu.memory_space<smem>>
    %115 = vector.extract_strided_slice %1 {offsets = [5, 0], sizes = [1, 128], strides = [1, 1]} : vector<16x128xf32> to vector<1x128xf32>
    %116 = vector.broadcast %114 : f32 to vector<1x128xf32>
    %117 = arith.mulf %116, %115 : vector<1x128xf32>
    %118 = arith.addf %113, %117 : vector<1x128xf32>
    %c26 = arith.constant 26 : index
    %119 = memref.load %arg1[%c26] : memref<70xf32, #tpu.memory_space<smem>>
    %120 = vector.extract_strided_slice %1 {offsets = [6, 0], sizes = [1, 128], strides = [1, 1]} : vector<16x128xf32> to vector<1x128xf32>
    %121 = vector.broadcast %119 : f32 to vector<1x128xf32>
    %122 = arith.mulf %121, %120 : vector<1x128xf32>
    %123 = arith.addf %118, %122 : vector<1x128xf32>
    %c30 = arith.constant 30 : index
    %124 = memref.load %arg1[%c30] : memref<70xf32, #tpu.memory_space<smem>>
    %125 = vector.extract_strided_slice %1 {offsets = [7, 0], sizes = [1, 128], strides = [1, 1]} : vector<16x128xf32> to vector<1x128xf32>
    %126 = vector.broadcast %124 : f32 to vector<1x128xf32>
    %127 = arith.mulf %126, %125 : vector<1x128xf32>
    %128 = arith.addf %123, %127 : vector<1x128xf32>
    %c34 = arith.constant 34 : index
    %129 = memref.load %arg1[%c34] : memref<70xf32, #tpu.memory_space<smem>>
    %130 = vector.extract_strided_slice %1 {offsets = [8, 0], sizes = [1, 128], strides = [1, 1]} : vector<16x128xf32> to vector<1x128xf32>
    %131 = vector.broadcast %129 : f32 to vector<1x128xf32>
    %132 = arith.mulf %131, %130 : vector<1x128xf32>
    %133 = arith.addf %128, %132 : vector<1x128xf32>
    %c3 = arith.constant 3 : index
    %134 = memref.load %arg1[%c3] : memref<70xf32, #tpu.memory_space<smem>>
    %135 = vector.extract_strided_slice %1 {offsets = [0, 0], sizes = [1, 128], strides = [1, 1]} : vector<16x128xf32> to vector<1x128xf32>
    %136 = vector.broadcast %134 : f32 to vector<1x128xf32>
    %137 = arith.mulf %136, %135 : vector<1x128xf32>
    %c7 = arith.constant 7 : index
    %138 = memref.load %arg1[%c7] : memref<70xf32, #tpu.memory_space<smem>>
    %139 = vector.extract_strided_slice %1 {offsets = [1, 0], sizes = [1, 128], strides = [1, 1]} : vector<16x128xf32> to vector<1x128xf32>
    %140 = vector.broadcast %138 : f32 to vector<1x128xf32>
    %141 = arith.mulf %140, %139 : vector<1x128xf32>
    %142 = arith.addf %137, %141 : vector<1x128xf32>
    %c11 = arith.constant 11 : index
    %143 = memref.load %arg1[%c11] : memref<70xf32, #tpu.memory_space<smem>>
    %144 = vector.extract_strided_slice %1 {offsets = [2, 0], sizes = [1, 128], strides = [1, 1]} : vector<16x128xf32> to vector<1x128xf32>
    %145 = vector.broadcast %143 : f32 to vector<1x128xf32>
    %146 = arith.mulf %145, %144 : vector<1x128xf32>
    %147 = arith.addf %142, %146 : vector<1x128xf32>
    %c15 = arith.constant 15 : index
    %148 = memref.load %arg1[%c15] : memref<70xf32, #tpu.memory_space<smem>>
    %149 = vector.extract_strided_slice %1 {offsets = [3, 0], sizes = [1, 128], strides = [1, 1]} : vector<16x128xf32> to vector<1x128xf32>
    %150 = vector.broadcast %148 : f32 to vector<1x128xf32>
    %151 = arith.mulf %150, %149 : vector<1x128xf32>
    %152 = arith.addf %147, %151 : vector<1x128xf32>
    %c19 = arith.constant 19 : index
    %153 = memref.load %arg1[%c19] : memref<70xf32, #tpu.memory_space<smem>>
    %154 = vector.extract_strided_slice %1 {offsets = [4, 0], sizes = [1, 128], strides = [1, 1]} : vector<16x128xf32> to vector<1x128xf32>
    %155 = vector.broadcast %153 : f32 to vector<1x128xf32>
    %156 = arith.mulf %155, %154 : vector<1x128xf32>
    %157 = arith.addf %152, %156 : vector<1x128xf32>
    %c23 = arith.constant 23 : index
    %158 = memref.load %arg1[%c23] : memref<70xf32, #tpu.memory_space<smem>>
    %159 = vector.extract_strided_slice %1 {offsets = [5, 0], sizes = [1, 128], strides = [1, 1]} : vector<16x128xf32> to vector<1x128xf32>
    %160 = vector.broadcast %158 : f32 to vector<1x128xf32>
    %161 = arith.mulf %160, %159 : vector<1x128xf32>
    %162 = arith.addf %157, %161 : vector<1x128xf32>
    %c27 = arith.constant 27 : index
    %163 = memref.load %arg1[%c27] : memref<70xf32, #tpu.memory_space<smem>>
    %164 = vector.extract_strided_slice %1 {offsets = [6, 0], sizes = [1, 128], strides = [1, 1]} : vector<16x128xf32> to vector<1x128xf32>
    %165 = vector.broadcast %163 : f32 to vector<1x128xf32>
    %166 = arith.mulf %165, %164 : vector<1x128xf32>
    %167 = arith.addf %162, %166 : vector<1x128xf32>
    %c31 = arith.constant 31 : index
    %168 = memref.load %arg1[%c31] : memref<70xf32, #tpu.memory_space<smem>>
    %169 = vector.extract_strided_slice %1 {offsets = [7, 0], sizes = [1, 128], strides = [1, 1]} : vector<16x128xf32> to vector<1x128xf32>
    %170 = vector.broadcast %168 : f32 to vector<1x128xf32>
    %171 = arith.mulf %170, %169 : vector<1x128xf32>
    %172 = arith.addf %167, %171 : vector<1x128xf32>
    %c35 = arith.constant 35 : index
    %173 = memref.load %arg1[%c35] : memref<70xf32, #tpu.memory_space<smem>>
    %174 = vector.extract_strided_slice %1 {offsets = [8, 0], sizes = [1, 128], strides = [1, 1]} : vector<16x128xf32> to vector<1x128xf32>
    %175 = vector.broadcast %173 : f32 to vector<1x128xf32>
    %176 = arith.mulf %175, %174 : vector<1x128xf32>
    %177 = arith.addf %172, %176 : vector<1x128xf32>
    %cst = arith.constant 0.000000e+00 : f32
    %178 = vector.broadcast %cst : f32 to vector<4x128xf32>
    %179 = tpu.concatenate %45, %89, %133, %177, %178 in 0 : vector<1x128xf32>, vector<1x128xf32>, vector<1x128xf32>, vector<1x128xf32>, vector<4x128xf32> -> vector<8x128xf32>
    %c0_3 = arith.constant 0 : index
    %c0_4 = arith.constant 0 : index
    %c0_5 = arith.constant 0 : index
    %180 = vector.load %arg2[%c0_3, %c0_4, %c0_5] : memref<1x128x128xf32, #tpu.memory_space<vmem>>, vector<1x128x128xf32>
    %181 = vector.shape_cast %180 : vector<1x128x128xf32> to vector<128x128xf32>
    %cst_6 = arith.constant dense<0.000000e+00> : vector<8x128xf32>
    %182 = tpu.matmul %179, %181, %cst_6 {dimension_numbers = #tpu.dot_dimension_numbers<[1], [0], [0], [1], [0, 0, 1, 1], [], []>, precision = #tpu.contract_precision<fp32>} : vector<8x128xf32>, vector<128x128xf32>, vector<8x128xf32> -> vector<8x128xf32>
    %183 = vector.extract_strided_slice %182 {offsets = [0, 0], sizes = [1, 128], strides = [1, 1]} : vector<8x128xf32> to vector<1x128xf32>
    %c36 = arith.constant 36 : index
    %184 = memref.load %arg1[%c36] : memref<70xf32, #tpu.memory_space<smem>>
    %185 = vector.broadcast %184 : f32 to vector<1x128xf32>
    %186 = arith.addf %183, %185 : vector<1x128xf32>
    %187 = math.tanh %186 : vector<1x128xf32>
    %188 = vector.extract_strided_slice %182 {offsets = [1, 0], sizes = [1, 128], strides = [1, 1]} : vector<8x128xf32> to vector<1x128xf32>
    %c37 = arith.constant 37 : index
    %189 = memref.load %arg1[%c37] : memref<70xf32, #tpu.memory_space<smem>>
    %190 = vector.broadcast %189 : f32 to vector<1x128xf32>
    %191 = arith.addf %188, %190 : vector<1x128xf32>
    %192 = math.tanh %191 : vector<1x128xf32>
    %193 = vector.extract_strided_slice %182 {offsets = [2, 0], sizes = [1, 128], strides = [1, 1]} : vector<8x128xf32> to vector<1x128xf32>
    %c38 = arith.constant 38 : index
    %194 = memref.load %arg1[%c38] : memref<70xf32, #tpu.memory_space<smem>>
    %195 = vector.broadcast %194 : f32 to vector<1x128xf32>
    %196 = arith.addf %193, %195 : vector<1x128xf32>
    %197 = math.tanh %196 : vector<1x128xf32>
    %198 = vector.extract_strided_slice %182 {offsets = [3, 0], sizes = [1, 128], strides = [1, 1]} : vector<8x128xf32> to vector<1x128xf32>
    %c39 = arith.constant 39 : index
    %199 = memref.load %arg1[%c39] : memref<70xf32, #tpu.memory_space<smem>>
    %200 = vector.broadcast %199 : f32 to vector<1x128xf32>
    %201 = arith.addf %198, %200 : vector<1x128xf32>
    %202 = math.tanh %201 : vector<1x128xf32>
    %cst_7 = arith.constant 0.000000e+00 : f32
    %203 = vector.broadcast %cst_7 : f32 to vector<4x128xf32>
    %204 = tpu.concatenate %187, %192, %197, %202, %203 in 0 : vector<1x128xf32>, vector<1x128xf32>, vector<1x128xf32>, vector<1x128xf32>, vector<4x128xf32> -> vector<8x128xf32>
    %c40 = arith.constant 40 : index
    %205 = memref.load %arg1[%c40] : memref<70xf32, #tpu.memory_space<smem>>
    %206 = vector.extract_strided_slice %204 {offsets = [0, 0], sizes = [1, 128], strides = [1, 1]} : vector<8x128xf32> to vector<1x128xf32>
    %207 = vector.broadcast %205 : f32 to vector<1x128xf32>
    %208 = arith.mulf %207, %206 : vector<1x128xf32>
    %c44 = arith.constant 44 : index
    %209 = memref.load %arg1[%c44] : memref<70xf32, #tpu.memory_space<smem>>
    %210 = vector.extract_strided_slice %204 {offsets = [1, 0], sizes = [1, 128], strides = [1, 1]} : vector<8x128xf32> to vector<1x128xf32>
    %211 = vector.broadcast %209 : f32 to vector<1x128xf32>
    %212 = arith.mulf %211, %210 : vector<1x128xf32>
    %213 = arith.addf %208, %212 : vector<1x128xf32>
    %c48 = arith.constant 48 : index
    %214 = memref.load %arg1[%c48] : memref<70xf32, #tpu.memory_space<smem>>
    %215 = vector.extract_strided_slice %204 {offsets = [2, 0], sizes = [1, 128], strides = [1, 1]} : vector<8x128xf32> to vector<1x128xf32>
    %216 = vector.broadcast %214 : f32 to vector<1x128xf32>
    %217 = arith.mulf %216, %215 : vector<1x128xf32>
    %218 = arith.addf %213, %217 : vector<1x128xf32>
    %c52 = arith.constant 52 : index
    %219 = memref.load %arg1[%c52] : memref<70xf32, #tpu.memory_space<smem>>
    %220 = vector.extract_strided_slice %204 {offsets = [3, 0], sizes = [1, 128], strides = [1, 1]} : vector<8x128xf32> to vector<1x128xf32>
    %221 = vector.broadcast %219 : f32 to vector<1x128xf32>
    %222 = arith.mulf %221, %220 : vector<1x128xf32>
    %223 = arith.addf %218, %222 : vector<1x128xf32>
    %c41 = arith.constant 41 : index
    %224 = memref.load %arg1[%c41] : memref<70xf32, #tpu.memory_space<smem>>
    %225 = vector.extract_strided_slice %204 {offsets = [0, 0], sizes = [1, 128], strides = [1, 1]} : vector<8x128xf32> to vector<1x128xf32>
    %226 = vector.broadcast %224 : f32 to vector<1x128xf32>
    %227 = arith.mulf %226, %225 : vector<1x128xf32>
    %c45 = arith.constant 45 : index
    %228 = memref.load %arg1[%c45] : memref<70xf32, #tpu.memory_space<smem>>
    %229 = vector.extract_strided_slice %204 {offsets = [1, 0], sizes = [1, 128], strides = [1, 1]} : vector<8x128xf32> to vector<1x128xf32>
    %230 = vector.broadcast %228 : f32 to vector<1x128xf32>
    %231 = arith.mulf %230, %229 : vector<1x128xf32>
    %232 = arith.addf %227, %231 : vector<1x128xf32>
    %c49 = arith.constant 49 : index
    %233 = memref.load %arg1[%c49] : memref<70xf32, #tpu.memory_space<smem>>
    %234 = vector.extract_strided_slice %204 {offsets = [2, 0], sizes = [1, 128], strides = [1, 1]} : vector<8x128xf32> to vector<1x128xf32>
    %235 = vector.broadcast %233 : f32 to vector<1x128xf32>
    %236 = arith.mulf %235, %234 : vector<1x128xf32>
    %237 = arith.addf %232, %236 : vector<1x128xf32>
    %c53 = arith.constant 53 : index
    %238 = memref.load %arg1[%c53] : memref<70xf32, #tpu.memory_space<smem>>
    %239 = vector.extract_strided_slice %204 {offsets = [3, 0], sizes = [1, 128], strides = [1, 1]} : vector<8x128xf32> to vector<1x128xf32>
    %240 = vector.broadcast %238 : f32 to vector<1x128xf32>
    %241 = arith.mulf %240, %239 : vector<1x128xf32>
    %242 = arith.addf %237, %241 : vector<1x128xf32>
    %c42 = arith.constant 42 : index
    %243 = memref.load %arg1[%c42] : memref<70xf32, #tpu.memory_space<smem>>
    %244 = vector.extract_strided_slice %204 {offsets = [0, 0], sizes = [1, 128], strides = [1, 1]} : vector<8x128xf32> to vector<1x128xf32>
    %245 = vector.broadcast %243 : f32 to vector<1x128xf32>
    %246 = arith.mulf %245, %244 : vector<1x128xf32>
    %c46 = arith.constant 46 : index
    %247 = memref.load %arg1[%c46] : memref<70xf32, #tpu.memory_space<smem>>
    %248 = vector.extract_strided_slice %204 {offsets = [1, 0], sizes = [1, 128], strides = [1, 1]} : vector<8x128xf32> to vector<1x128xf32>
    %249 = vector.broadcast %247 : f32 to vector<1x128xf32>
    %250 = arith.mulf %249, %248 : vector<1x128xf32>
    %251 = arith.addf %246, %250 : vector<1x128xf32>
    %c50 = arith.constant 50 : index
    %252 = memref.load %arg1[%c50] : memref<70xf32, #tpu.memory_space<smem>>
    %253 = vector.extract_strided_slice %204 {offsets = [2, 0], sizes = [1, 128], strides = [1, 1]} : vector<8x128xf32> to vector<1x128xf32>
    %254 = vector.broadcast %252 : f32 to vector<1x128xf32>
    %255 = arith.mulf %254, %253 : vector<1x128xf32>
    %256 = arith.addf %251, %255 : vector<1x128xf32>
    %c54 = arith.constant 54 : index
    %257 = memref.load %arg1[%c54] : memref<70xf32, #tpu.memory_space<smem>>
    %258 = vector.extract_strided_slice %204 {offsets = [3, 0], sizes = [1, 128], strides = [1, 1]} : vector<8x128xf32> to vector<1x128xf32>
    %259 = vector.broadcast %257 : f32 to vector<1x128xf32>
    %260 = arith.mulf %259, %258 : vector<1x128xf32>
    %261 = arith.addf %256, %260 : vector<1x128xf32>
    %c43 = arith.constant 43 : index
    %262 = memref.load %arg1[%c43] : memref<70xf32, #tpu.memory_space<smem>>
    %263 = vector.extract_strided_slice %204 {offsets = [0, 0], sizes = [1, 128], strides = [1, 1]} : vector<8x128xf32> to vector<1x128xf32>
    %264 = vector.broadcast %262 : f32 to vector<1x128xf32>
    %265 = arith.mulf %264, %263 : vector<1x128xf32>
    %c47 = arith.constant 47 : index
    %266 = memref.load %arg1[%c47] : memref<70xf32, #tpu.memory_space<smem>>
    %267 = vector.extract_strided_slice %204 {offsets = [1, 0], sizes = [1, 128], strides = [1, 1]} : vector<8x128xf32> to vector<1x128xf32>
    %268 = vector.broadcast %266 : f32 to vector<1x128xf32>
    %269 = arith.mulf %268, %267 : vector<1x128xf32>
    %270 = arith.addf %265, %269 : vector<1x128xf32>
    %c51 = arith.constant 51 : index
    %271 = memref.load %arg1[%c51] : memref<70xf32, #tpu.memory_space<smem>>
    %272 = vector.extract_strided_slice %204 {offsets = [2, 0], sizes = [1, 128], strides = [1, 1]} : vector<8x128xf32> to vector<1x128xf32>
    %273 = vector.broadcast %271 : f32 to vector<1x128xf32>
    %274 = arith.mulf %273, %272 : vector<1x128xf32>
    %275 = arith.addf %270, %274 : vector<1x128xf32>
    %c55 = arith.constant 55 : index
    %276 = memref.load %arg1[%c55] : memref<70xf32, #tpu.memory_space<smem>>
    %277 = vector.extract_strided_slice %204 {offsets = [3, 0], sizes = [1, 128], strides = [1, 1]} : vector<8x128xf32> to vector<1x128xf32>
    %278 = vector.broadcast %276 : f32 to vector<1x128xf32>
    %279 = arith.mulf %278, %277 : vector<1x128xf32>
    %280 = arith.addf %275, %279 : vector<1x128xf32>
    %cst_8 = arith.constant 0.000000e+00 : f32
    %281 = vector.broadcast %cst_8 : f32 to vector<4x128xf32>
    %282 = tpu.concatenate %223, %242, %261, %280, %281 in 0 : vector<1x128xf32>, vector<1x128xf32>, vector<1x128xf32>, vector<1x128xf32>, vector<4x128xf32> -> vector<8x128xf32>
    %c0_9 = arith.constant 0 : index
    %c0_10 = arith.constant 0 : index
    %c0_11 = arith.constant 0 : index
    %283 = vector.load %arg2[%c0_9, %c0_10, %c0_11] : memref<1x128x128xf32, #tpu.memory_space<vmem>>, vector<1x128x128xf32>
    %284 = vector.shape_cast %283 : vector<1x128x128xf32> to vector<128x128xf32>
    %cst_12 = arith.constant dense<0.000000e+00> : vector<8x128xf32>
    %285 = tpu.matmul %282, %284, %cst_12 {dimension_numbers = #tpu.dot_dimension_numbers<[1], [0], [0], [1], [0, 0, 1, 1], [], []>, precision = #tpu.contract_precision<fp32>} : vector<8x128xf32>, vector<128x128xf32>, vector<8x128xf32> -> vector<8x128xf32>
    %286 = vector.extract_strided_slice %285 {offsets = [0, 0], sizes = [1, 128], strides = [1, 1]} : vector<8x128xf32> to vector<1x128xf32>
    %c56 = arith.constant 56 : index
    %287 = memref.load %arg1[%c56] : memref<70xf32, #tpu.memory_space<smem>>
    %288 = vector.broadcast %287 : f32 to vector<1x128xf32>
    %289 = arith.addf %286, %288 : vector<1x128xf32>
    %290 = math.tanh %289 : vector<1x128xf32>
    %291 = vector.extract_strided_slice %285 {offsets = [1, 0], sizes = [1, 128], strides = [1, 1]} : vector<8x128xf32> to vector<1x128xf32>
    %c57 = arith.constant 57 : index
    %292 = memref.load %arg1[%c57] : memref<70xf32, #tpu.memory_space<smem>>
    %293 = vector.broadcast %292 : f32 to vector<1x128xf32>
    %294 = arith.addf %291, %293 : vector<1x128xf32>
    %295 = math.tanh %294 : vector<1x128xf32>
    %296 = vector.extract_strided_slice %285 {offsets = [2, 0], sizes = [1, 128], strides = [1, 1]} : vector<8x128xf32> to vector<1x128xf32>
    %c58 = arith.constant 58 : index
    %297 = memref.load %arg1[%c58] : memref<70xf32, #tpu.memory_space<smem>>
    %298 = vector.broadcast %297 : f32 to vector<1x128xf32>
    %299 = arith.addf %296, %298 : vector<1x128xf32>
    %300 = math.tanh %299 : vector<1x128xf32>
    %301 = vector.extract_strided_slice %285 {offsets = [3, 0], sizes = [1, 128], strides = [1, 1]} : vector<8x128xf32> to vector<1x128xf32>
    %c59 = arith.constant 59 : index
    %302 = memref.load %arg1[%c59] : memref<70xf32, #tpu.memory_space<smem>>
    %303 = vector.broadcast %302 : f32 to vector<1x128xf32>
    %304 = arith.addf %301, %303 : vector<1x128xf32>
    %305 = math.tanh %304 : vector<1x128xf32>
    %cst_13 = arith.constant 0.000000e+00 : f32
    %306 = vector.broadcast %cst_13 : f32 to vector<4x128xf32>
    %307 = tpu.concatenate %290, %295, %300, %305, %306 in 0 : vector<1x128xf32>, vector<1x128xf32>, vector<1x128xf32>, vector<1x128xf32>, vector<4x128xf32> -> vector<8x128xf32>
    %c60 = arith.constant 60 : index
    %308 = memref.load %arg1[%c60] : memref<70xf32, #tpu.memory_space<smem>>
    %309 = vector.extract_strided_slice %307 {offsets = [0, 0], sizes = [1, 128], strides = [1, 1]} : vector<8x128xf32> to vector<1x128xf32>
    %310 = vector.broadcast %308 : f32 to vector<1x128xf32>
    %311 = arith.mulf %310, %309 : vector<1x128xf32>
    %c62 = arith.constant 62 : index
    %312 = memref.load %arg1[%c62] : memref<70xf32, #tpu.memory_space<smem>>
    %313 = vector.extract_strided_slice %307 {offsets = [1, 0], sizes = [1, 128], strides = [1, 1]} : vector<8x128xf32> to vector<1x128xf32>
    %314 = vector.broadcast %312 : f32 to vector<1x128xf32>
    %315 = arith.mulf %314, %313 : vector<1x128xf32>
    %316 = arith.addf %311, %315 : vector<1x128xf32>
    %c64 = arith.constant 64 : index
    %317 = memref.load %arg1[%c64] : memref<70xf32, #tpu.memory_space<smem>>
    %318 = vector.extract_strided_slice %307 {offsets = [2, 0], sizes = [1, 128], strides = [1, 1]} : vector<8x128xf32> to vector<1x128xf32>
    %319 = vector.broadcast %317 : f32 to vector<1x128xf32>
    %320 = arith.mulf %319, %318 : vector<1x128xf32>
    %321 = arith.addf %316, %320 : vector<1x128xf32>
    %c66 = arith.constant 66 : index
    %322 = memref.load %arg1[%c66] : memref<70xf32, #tpu.memory_space<smem>>
    %323 = vector.extract_strided_slice %307 {offsets = [3, 0], sizes = [1, 128], strides = [1, 1]} : vector<8x128xf32> to vector<1x128xf32>
    %324 = vector.broadcast %322 : f32 to vector<1x128xf32>
    %325 = arith.mulf %324, %323 : vector<1x128xf32>
    %326 = arith.addf %321, %325 : vector<1x128xf32>
    %c61 = arith.constant 61 : index
    %327 = memref.load %arg1[%c61] : memref<70xf32, #tpu.memory_space<smem>>
    %328 = vector.extract_strided_slice %307 {offsets = [0, 0], sizes = [1, 128], strides = [1, 1]} : vector<8x128xf32> to vector<1x128xf32>
    %329 = vector.broadcast %327 : f32 to vector<1x128xf32>
    %330 = arith.mulf %329, %328 : vector<1x128xf32>
    %c63 = arith.constant 63 : index
    %331 = memref.load %arg1[%c63] : memref<70xf32, #tpu.memory_space<smem>>
    %332 = vector.extract_strided_slice %307 {offsets = [1, 0], sizes = [1, 128], strides = [1, 1]} : vector<8x128xf32> to vector<1x128xf32>
    %333 = vector.broadcast %331 : f32 to vector<1x128xf32>
    %334 = arith.mulf %333, %332 : vector<1x128xf32>
    %335 = arith.addf %330, %334 : vector<1x128xf32>
    %c65 = arith.constant 65 : index
    %336 = memref.load %arg1[%c65] : memref<70xf32, #tpu.memory_space<smem>>
    %337 = vector.extract_strided_slice %307 {offsets = [2, 0], sizes = [1, 128], strides = [1, 1]} : vector<8x128xf32> to vector<1x128xf32>
    %338 = vector.broadcast %336 : f32 to vector<1x128xf32>
    %339 = arith.mulf %338, %337 : vector<1x128xf32>
    %340 = arith.addf %335, %339 : vector<1x128xf32>
    %c67 = arith.constant 67 : index
    %341 = memref.load %arg1[%c67] : memref<70xf32, #tpu.memory_space<smem>>
    %342 = vector.extract_strided_slice %307 {offsets = [3, 0], sizes = [1, 128], strides = [1, 1]} : vector<8x128xf32> to vector<1x128xf32>
    %343 = vector.broadcast %341 : f32 to vector<1x128xf32>
    %344 = arith.mulf %343, %342 : vector<1x128xf32>
    %345 = arith.addf %340, %344 : vector<1x128xf32>
    %cst_14 = arith.constant 0.000000e+00 : f32
    %346 = vector.broadcast %cst_14 : f32 to vector<6x128xf32>
    %347 = tpu.concatenate %326, %345, %346 in 0 : vector<1x128xf32>, vector<1x128xf32>, vector<6x128xf32> -> vector<8x128xf32>
    %c0_15 = arith.constant 0 : index
    %c0_16 = arith.constant 0 : index
    %c0_17 = arith.constant 0 : index
    %348 = vector.load %arg2[%c0_15, %c0_16, %c0_17] : memref<1x128x128xf32, #tpu.memory_space<vmem>>, vector<1x128x128xf32>
    %349 = vector.shape_cast %348 : vector<1x128x128xf32> to vector<128x128xf32>
    %cst_18 = arith.constant dense<0.000000e+00> : vector<8x128xf32>
    %350 = tpu.matmul %347, %349, %cst_18 {dimension_numbers = #tpu.dot_dimension_numbers<[1], [0], [0], [1], [0, 0, 1, 1], [], []>, precision = #tpu.contract_precision<fp32>} : vector<8x128xf32>, vector<128x128xf32>, vector<8x128xf32> -> vector<8x128xf32>
    %351 = vector.extract_strided_slice %350 {offsets = [0, 0], sizes = [1, 128], strides = [1, 1]} : vector<8x128xf32> to vector<1x128xf32>
    %c68 = arith.constant 68 : index
    %352 = memref.load %arg1[%c68] : memref<70xf32, #tpu.memory_space<smem>>
    %353 = vector.broadcast %352 : f32 to vector<1x128xf32>
    %354 = arith.addf %351, %353 : vector<1x128xf32>
    %355 = vector.extract_strided_slice %350 {offsets = [1, 0], sizes = [1, 128], strides = [1, 1]} : vector<8x128xf32> to vector<1x128xf32>
    %c69 = arith.constant 69 : index
    %356 = memref.load %arg1[%c69] : memref<70xf32, #tpu.memory_space<smem>>
    %357 = vector.broadcast %356 : f32 to vector<1x128xf32>
    %358 = arith.addf %355, %357 : vector<1x128xf32>
    %cst_19 = arith.constant 0.000000e+00 : f32
    %359 = vector.broadcast %cst_19 : f32 to vector<6x128xf32>
    %360 = tpu.concatenate %354, %358, %359 in 0 : vector<1x128xf32>, vector<1x128xf32>, vector<6x128xf32> -> vector<8x128xf32>
    %c0_20 = arith.constant 0 : index
    %c0_21 = arith.constant 0 : index
    %c0_22 = arith.constant 0 : index
    %361 = vector.load %arg4[%c0_20, %c0_21, %c0_22] : memref<1x8x128xf32, #tpu.memory_space<vmem>>, vector<1x8x128xf32>
    %362 = vector.shape_cast %361 : vector<1x8x128xf32> to vector<8x128xf32>
    %363 = vector.shape_cast %360 : vector<8x128xf32> to vector<1x8x128xf32>
    tpu.vector_store %arg4[%c0_20, %c0_21, %c0_22], %363 {strides = array<i32>} : memref<1x8x128xf32, #tpu.memory_space<vmem>>, vector<1x8x128xf32>,
    return
  }
  func.func @transform_0(%arg0: i32) -> i32 {
    %c0_i32 = arith.constant 0 : i32
    %c0_i32_0 = arith.constant 0 : i32
    return %c0_i32 : i32
  }
  func.func @transform_1(%arg0: i32) -> (i32, i32, i32) {
    %c0_i32 = arith.constant 0 : i32
    %c0_i32_0 = arith.constant 0 : i32
    %c0_i32_1 = arith.constant 0 : i32
    return %arg0, %c0_i32, %c0_i32_0 : i32, i32, i32
  }
  func.func @transform_2(%arg0: i32) -> (i32, i32, i32) {
    %c0_i32 = arith.constant 0 : i32
    %c0_i32_0 = arith.constant 0 : i32
    %c0_i32_1 = arith.constant 0 : i32
    return %arg0, %c0_i32, %c0_i32_0 : i32, i32, i32
  }
  func.func @transform_3(%arg0: i32) -> (i32, i32, i32) {
    %c0_i32 = arith.constant 0 : i32
    %c0_i32_0 = arith.constant 0 : i32
    %c0_i32_1 = arith.constant 0 : i32
    return %arg0, %c0_i32, %c0_i32_0 : i32, i32, i32
  }
}

</mosaic_0001>

<llo_original>
// kernel: tpu_custom_call.1
$region0: #{tpu_custom_call.1}
  #allocation0 [shape = 'u32[]', space=smem, size = 0x4, offset = 0x4, fixed_abs, tag = 'smem constant byte address 0x4 - core index']
  #allocation1 [shape = 'u32[72,128]{1,0:T(1,128)}', space=vmem, size = 0x9000, scoped, tag = 'internal scratch']
  %s0 = inlined_call_operand.hbm [shape: f32[70], index: 0, kind: input, shape index: {}]
  %s1 = inlined_call_operand.hbm [shape: f32[4,128,128], index: 1, kind: input, shape index: {}]
  %s2 = inlined_call_operand.hbm [shape: f32[4,16,128], index: 2, kind: input, shape index: {}]
  %s3 = inlined_call_operand.hbm [shape: f32[4,8,128], index: 3, kind: output, shape index: {}]
  %s4 = sld [smem:[#allocation0]]
  $region57: #{tpu_custom_call.1} parent=0
    _
  %s6 = ssub.s32 1, %s4
  %s7 = scalar_select 0, %s6, %s4
  $region1: #{tpu_custom_call.1} parent=0
    #allocation2 [shape = 'u8[512]{0}', space=smem, size = 0x200, scoped, tag = 'input window, operand 0, single buffered']
    #allocation3 [shape = 's32[2]{0}', space=sflag, size = 0x8, scoped, tag = 'scoped memory for tpu_custom_call.1']
    #allocation4 [shape = 's32[2]{0}', space=sflag, size = 0x8, scoped, tag = 'scoped memory for tpu_custom_call.1']
    #allocation5 [shape = 's32[2]{0}', space=sflag, size = 0x8, scoped, tag = 'scoped memory for tpu_custom_call.1']
    #allocation6 [shape = 'u8[131072]{0}', space=vmem, size = 0x20000, scoped, tag = 'input window, operand 1']
    #allocation7 [shape = 'u8[16384]{0}', space=vmem, size = 0x4000, scoped, tag = 'input window, operand 2']
    #allocation8 [shape = 's32[2]{0}', space=sflag, size = 0x8, scoped, tag = 'scoped memory for tpu_custom_call.1']
    #allocation9 [shape = 'u8[8192]{0}', space=vmem, size = 0x2000, scoped, tag = 'output window, operand 0']
    %8 = vsyncpa [#allocation5], 0
    %9 = vsyncpa [#allocation3], 0
    %s10 = scalar_lea.sflag [#allocation3], 1
    %11 = vsyncpa %s10, 0
    %12 = vsyncpa [#allocation8], 0
    %s13 = scalar_lea.sflag [#allocation8], 1
    %14 = vsyncpa %s13, 0
    %15 = vsyncpa [#allocation4], 0
    %s16 = scalar_lea.sflag [#allocation4], 1
    %17 = vsyncpa %s16, 0
    loop: start=0, step=1, limit=6
    $region2: #{tpu_custom_call.1} parent=1 // loop_pre_header
      _
    $region3: #{tpu_custom_call.1} parent=1 // loop_header
      %s19 = sphi 0, %s23
      %p20 = scmp.ge.s32.totalorder %s19, 6
      %s27 = sphi 0, %s27
      %s29 = sphi 0, %s27
      %s30 = sphi 0, %s29
      %s44 = sphi 0, %s30
      %s50 = sphi 0, %s52
      %s53 = sphi 0, %s50
      %s54 = sphi 0, %s53
      %s70 = sphi 0, %s54
      %s76 = sphi 0, %s78
      %s79 = sphi 0, %s76
      %s80 = sphi 0, %s79
      %s96 = sphi 0, %s80
      %s102 = sphi 0, %s104
      %s105 = sphi 0, %s102
      %s106 = sphi 0, %s105
      %s122 = sphi 0, %s106
    $region4: #{tpu_custom_call.1} parent=1 // loop_header_branch
      %22 = sbr.rel (%p20) target = $region8
    $region5: #{tpu_custom_call.1} parent=1 // loop_body
      %s24 = ssub.s32 %s19, 1
      %s25 = ssub.s32 %s19, 2
      %s26 = sadd.s32 %s19, 1
      %s28 = sadd.s32 %s27, 1
      %p31 = scmp.eq.s32.totalorder %s19, 3
      %p32 = scmp.ne.s32.totalorder %s27, %s29
      %p33 = scmp.eq.s32.totalorder %s19, 0
      %p34 = por %p32, %p33
      %p35 = scmp.ne.s32.totalorder %s27, %s29
      %p36 = scmp.eq.s32.totalorder %s24, 3
      %p37 = por %p35, %p36
      %p38 = scmp.ne.s32.totalorder %s29, %s30
      %p39 = scmp.eq.s32.totalorder %s24, 0
      %p40 = por %p38, %p39
      %p41 = scmp.ne.s32.totalorder %s29, %s30
      %p42 = scmp.eq.s32.totalorder %s25, 3
      %p43 = por %p41, %p42
      %p45 = scmp.ne.s32.totalorder %s30, %s44
      %p46 = scmp.eq.s32.totalorder %s25, 0
      %p47 = por %p45, %p46
      %s48 = ssub.s32 %s19, %s26
      %p49 = scmp.eq.s32.totalorder %s48, 0
      %s51 = sadd.s32 %s50, 1
      %s52 = scalar_select %p49, %s50, %s51
      %p55 = pneg %p49
      %p56 = scmp.eq.s32.totalorder %s19, 3
      %p57 = por %p55, %p56
      %p58 = scmp.ne.s32.totalorder %s50, %s53
      %p59 = scmp.eq.s32.totalorder %s19, 0
      %p60 = por %p58, %p59
      %p61 = scmp.ne.s32.totalorder %s50, %s53
      %p62 = scmp.eq.s32.totalorder %s24, 3
      %p63 = por %p61, %p62
      %p64 = scmp.ne.s32.totalorder %s53, %s54
      %p65 = scmp.eq.s32.totalorder %s24, 0
      %p66 = por %p64, %p65
      %p67 = scmp.ne.s32.totalorder %s53, %s54
      %p68 = scmp.eq.s32.totalorder %s25, 3
      %p69 = por %p67, %p68
      %p71 = scmp.ne.s32.totalorder %s54, %s70
      %p72 = scmp.eq.s32.totalorder %s25, 0
      %p73 = por %p71, %p72
      %s74 = ssub.s32 %s19, %s26
      %p75 = scmp.eq.s32.totalorder %s74, 0
      %s77 = sadd.s32 %s76, 1
      %s78 = scalar_select %p75, %s76, %s77
      %p81 = pneg %p75
      %p82 = scmp.eq.s32.totalorder %s19, 3
      %p83 = por %p81, %p82
      %p84 = scmp.ne.s32.totalorder %s76, %s79
      %p85 = scmp.eq.s32.totalorder %s19, 0
      %p86 = por %p84, %p85
      %p87 = scmp.ne.s32.totalorder %s76, %s79
      %p88 = scmp.eq.s32.totalorder %s24, 3
      %p89 = por %p87, %p88
      %p90 = scmp.ne.s32.totalorder %s79, %s80
      %p91 = scmp.eq.s32.totalorder %s24, 0
      %p92 = por %p90, %p91
      %p93 = scmp.ne.s32.totalorder %s79, %s80
      %p94 = scmp.eq.s32.totalorder %s25, 3
      %p95 = por %p93, %p94
      %p97 = scmp.ne.s32.totalorder %s80, %s96
      %p98 = scmp.eq.s32.totalorder %s25, 0
      %p99 = por %p97, %p98
      %s100 = ssub.s32 %s19, %s26
      %p101 = scmp.eq.s32.totalorder %s100, 0
      %s103 = sadd.s32 %s102, 1
      %s104 = scalar_select %p101, %s102, %s103
      %p107 = pneg %p101
      %p108 = scmp.eq.s32.totalorder %s19, 3
      %p109 = por %p107, %p108
      %p110 = scmp.ne.s32.totalorder %s102, %s105
      %p111 = scmp.eq.s32.totalorder %s19, 0
      %p112 = por %p110, %p111
      %p113 = scmp.ne.s32.totalorder %s102, %s105
      %p114 = scmp.eq.s32.totalorder %s24, 3
      %p115 = por %p113, %p114
      %p116 = scmp.ne.s32.totalorder %s105, %s106
      %p117 = scmp.eq.s32.totalorder %s24, 0
      %p118 = por %p116, %p117
      %p119 = scmp.ne.s32.totalorder %s105, %s106
      %p120 = scmp.eq.s32.totalorder %s25, 3
      %p121 = por %p119, %p120
      %p123 = scmp.ne.s32.totalorder %s106, %s122
      %p124 = scmp.eq.s32.totalorder %s25, 0
      %p125 = por %p123, %p124
      %p126 = scmp.le.s32.totalorder 1, %s19
      %p127 = scmp.lt.s32.totalorder %s19, 5
      %p128 = pnand %p126, %p127
      %p129 = pneg %p128
      // Predicated region
      $region9: #{tpu_custom_call.1} parent=5 // pred_check
        _
      $region10: #{tpu_custom_call.1} parent=5 // pred_check_branch
        %131 = sbr.rel (%p128) target = $region12
      $region11: #{tpu_custom_call.1} parent=5 // pred_region
        %s132 = ssub.s32 %s19, 1
        // Predicated region
        $region13: #{tpu_custom_call.1} parent=11 // pred_check
          %p133 = pneg %p40
        $region14: #{tpu_custom_call.1} parent=11 // pred_check_branch
          %135 = sbr.rel (%p133) target = $region16
        $region15: #{tpu_custom_call.1} parent=11 // pred_region
          %137 = vsyncadd [#allocation5], 0
          %s139 = sshll.u32 %s0, 4
          %s140 = int_to_ptr.hbm [resolvable:$true] %s139
          %142 = dma.hbm_to_smem %s140, 16, [#allocation2], [#allocation5]
        $region16: #{tpu_custom_call.1} parent=11 // pred_fallthru
          _
      $region12: #{tpu_custom_call.1} parent=5 // pred_fallthru
        _
      %p143 = scmp.lt.s32.totalorder %s19, 4
      // Predicated region
      $region17: #{tpu_custom_call.1} parent=5 // pred_check
        %p144 = pneg %p143
      $region18: #{tpu_custom_call.1} parent=5 // pred_check_branch
        %146 = sbr.rel (%p144) target = $region20
      $region19: #{tpu_custom_call.1} parent=5 // pred_region
        // Predicated region
        $region21: #{tpu_custom_call.1} parent=19 // pred_check
          %p147 = pneg %p60
        $region22: #{tpu_custom_call.1} parent=19 // pred_check_branch
          %149 = sbr.rel (%p147) target = $region24
        $region23: #{tpu_custom_call.1} parent=19 // pred_region
          %s150 = sand.u32 %s50, 1
          %s151 = scalar_lea.sflag [#allocation3], %s150
          %s152 = sand.u32 %s50, 1
          %s153 = smul.addr %s152, 128
          %s154 = scalar_lea.vmem [#allocation6], %s153
          %156 = vsyncadd %s151, 0
          %s157 = smul.addr %s19, 16
          %s158 = smul.addr %s157, 8
          %s159 = scalar_lea.hbm %s1, %s158
          %s160 = sshll.u32 %s159, 4
          %s161 = int_to_ptr.hbm [resolvable:$true] %s160
          %s162 = sshll.u32 %s154, 4
          %s163 = int_to_ptr.vmem [resolvable:$true] %s162
          %168 = dma.hbm_to_vmem [thread:$0]  %s161, 2048, %s163, %s151, 128, 128, 8
        $region24: #{tpu_custom_call.1} parent=19 // pred_fallthru
          _
        // Predicated region
        $region25: #{tpu_custom_call.1} parent=19 // pred_check
          %p169 = pneg %p86
        $region26: #{tpu_custom_call.1} parent=19 // pred_check_branch
          %171 = sbr.rel (%p169) target = $region28
        $region27: #{tpu_custom_call.1} parent=19 // pred_region
          %s172 = sand.u32 %s76, 1
          %s173 = scalar_lea.sflag [#allocation8], %s172
          %s174 = sand.u32 %s76, 1
          %s175 = smul.addr %s174, 16
          %s176 = scalar_lea.vmem [#allocation7], %s175
          %178 = vsyncadd %s173, 0
          %s179 = smul.addr %s19, 2
          %s180 = smul.addr %s179, 8
          %s181 = scalar_lea.hbm %s2, %s180
          %s182 = sshll.u32 %s181, 4
          %s183 = int_to_ptr.hbm [resolvable:$true] %s182
          %s184 = sshll.u32 %s176, 4
          %s185 = int_to_ptr.vmem [resolvable:$true] %s184
          %190 = dma.hbm_to_vmem [thread:$0]  %s183, 256, %s185, %s173, 128, 128, 8
        $region28: #{tpu_custom_call.1} parent=19 // pred_fallthru
          _
      $region20: #{tpu_custom_call.1} parent=5 // pred_fallthru
        _
      %p191 = scmp.le.s32.totalorder 1, %s19
      %p192 = scmp.lt.s32.totalorder %s19, 5
      %p193 = pnand %p191, %p192
      %p194 = pneg %p193
      // Predicated region
      $region29: #{tpu_custom_call.1} parent=5 // pred_check
        _
      $region30: #{tpu_custom_call.1} parent=5 // pred_check_branch
        %196 = sbr.rel (%p193) target = $region32
      $region31: #{tpu_custom_call.1} parent=5 // pred_region
        %s197 = ssub.s32 %s19, 1
        // Predicated region
        $region33: #{tpu_custom_call.1} parent=31 // pred_check
          %p198 = pneg %p40
        $region34: #{tpu_custom_call.1} parent=31 // pred_check_branch
          %200 = sbr.rel (%p198) target = $region36
        $region35: #{tpu_custom_call.1} parent=31 // pred_region
          %202 = dma.done [#allocation5], 16
        $region36: #{tpu_custom_call.1} parent=31 // pred_fallthru
          _
        %s203 = sand.u32 %s53, 1
        %s204 = scalar_lea.sflag [#allocation3], %s203
        %s205 = sand.u32 %s53, 1
        %s206 = smul.addr %s205, 128
        %s207 = scalar_lea.vmem [#allocation6], %s206
        // Predicated region
        $region37: #{tpu_custom_call.1} parent=31 // pred_check
          %p208 = pneg %p66
        $region38: #{tpu_custom_call.1} parent=31 // pred_check_branch
          %210 = sbr.rel (%p208) target = $region40
        $region39: #{tpu_custom_call.1} parent=31 // pred_region
          %212 = dma.done %s204, 2048
        $region40: #{tpu_custom_call.1} parent=31 // pred_fallthru
          _
        %s213 = sand.u32 %s79, 1
        %s214 = scalar_lea.sflag [#allocation8], %s213
        %s215 = sand.u32 %s79, 1
        %s216 = smul.addr %s215, 16
        %s217 = scalar_lea.vmem [#allocation7], %s216
        // Predicated region
        $region41: #{tpu_custom_call.1} parent=31 // pred_check
          %p218 = pneg %p92
        $region42: #{tpu_custom_call.1} parent=31 // pred_check_branch
          %220 = sbr.rel (%p218) target = $region44
        $region43: #{tpu_custom_call.1} parent=31 // pred_region
          %222 = dma.done %s214, 256
        $region44: #{tpu_custom_call.1} parent=31 // pred_fallthru
          _
        %223 = sfence
        %p224 = pneg %p40
        %p225 = pneg %p37
        %s226 = sand.u32 %s53, 1
        %s227 = scalar_lea.sflag [#allocation3], %s226
        %s228 = sand.u32 %s53, 1
        %s229 = smul.addr %s228, 128
        %s230 = scalar_lea.vmem [#allocation6], %s229
        %p231 = pneg %p66
        %p232 = pneg %p63
        %s233 = sand.u32 %s79, 1
        %s234 = scalar_lea.sflag [#allocation8], %s233
        %s235 = sand.u32 %s79, 1
        %s236 = smul.addr %s235, 16
        %s237 = scalar_lea.vmem [#allocation7], %s236
        %p238 = pneg %p92
        %p239 = pneg %p89
        %p240 = pneg %p118
        %p241 = pneg %p115
        %s242 = sand.u32 %s105, 1
        %s243 = scalar_lea.sflag [#allocation4], %s242
        %s244 = sand.u32 %s105, 1
        %s245 = smul.addr %s244, 8
        %s246 = scalar_lea.vmem [#allocation9], %s245
        %v247 = vld [vmem:[%s217] sm:$0xff]
        %v248 = vld [vmem:[%s217 + $0x8] sm:$0xff]
        %s249 = sld [smem:[#allocation2]]
        %v250 = vstv %s249
        %v251 = vmul.f32 %v250, %v247
        %s252 = sld [smem:[#allocation2 + $0x4]]
        %v253 = vstv %s252
        %v254 = vmul.f32 %v253, %v247
        %v256 = vrot.slane %v254, 1
        %v258 = vadd.f32 %v251, %v256
        %s259 = sld [smem:[#allocation2 + $0x8]]
        %v260 = vstv %s259
        %v261 = vmul.f32 %v260, %v247
        %v263 = vrot.slane %v261, 2
        %v265 = vadd.f32 %v258, %v263
        %s266 = sld [smem:[#allocation2 + $0xc]]
        %v267 = vstv %s266
        %v268 = vmul.f32 %v267, %v247
        %v270 = vrot.slane %v268, 3
        %v272 = vadd.f32 %v265, %v270
        %s273 = sld [smem:[#allocation2 + $0x10]]
        %v274 = vstv %s273
        %v275 = vmul.f32 %v274, %v247
        %v277 = vrot.slane %v275, 4
        %v279 = vadd.f32 %v272, %v277
        %s280 = sld [smem:[#allocation2 + $0x14]]
        %v281 = vstv %s280
        %v282 = vmul.f32 %v281, %v247
        %v284 = vrot.slane %v282, 5
        %v286 = vadd.f32 %v279, %v284
        %s287 = sld [smem:[#allocation2 + $0x18]]
        %v288 = vstv %s287
        %v289 = vmul.f32 %v288, %v247
        %v291 = vrot.slane %v289, 6
        %v293 = vadd.f32 %v286, %v291
        %s294 = sld [smem:[#allocation2 + $0x1c]]
        %v295 = vstv %s294
        %v296 = vmul.f32 %v295, %v247
        %v298 = vrot.slane %v296, 7
        %v300 = vadd.f32 %v293, %v298
        %s301 = sld [smem:[#allocation2 + $0x20]]
        %v302 = vstv %s301
        %v303 = vmul.f32 %v302, %v248
        %v304 = vadd.f32 %v300, %v303
        %s305 = sld [smem:[#allocation2 + $0x1]]
        %v306 = vstv %s305
        %v307 = vmul.f32 %v306, %v247
        %s308 = sld [smem:[#allocation2 + $0x5]]
        %v309 = vstv %s308
        %v310 = vmul.f32 %v309, %v247
        %v312 = vrot.slane %v310, 1
        %v314 = vadd.f32 %v307, %v312
        %s315 = sld [smem:[#allocation2 + $0x9]]
        %v316 = vstv %s315
        %v317 = vmul.f32 %v316, %v247
        %v319 = vrot.slane %v317, 2
        %v321 = vadd.f32 %v314, %v319
        %s322 = sld [smem:[#allocation2 + $0xd]]
        %v323 = vstv %s322
        %v324 = vmul.f32 %v323, %v247
        %v326 = vrot.slane %v324, 3
        %v328 = vadd.f32 %v321, %v326
        %s329 = sld [smem:[#allocation2 + $0x11]]
        %v330 = vstv %s329
        %v331 = vmul.f32 %v330, %v247
        %v333 = vrot.slane %v331, 4
        %v335 = vadd.f32 %v328, %v333
        %s336 = sld [smem:[#allocation2 + $0x15]]
        %v337 = vstv %s336
        %v338 = vmul.f32 %v337, %v247
        %v340 = vrot.slane %v338, 5
        %v342 = vadd.f32 %v335, %v340
        %s343 = sld [smem:[#allocation2 + $0x19]]
        %v344 = vstv %s343
        %v345 = vmul.f32 %v344, %v247
        %v347 = vrot.slane %v345, 6
        %v349 = vadd.f32 %v342, %v347
        %s350 = sld [smem:[#allocation2 + $0x1d]]
        %v351 = vstv %s350
        %v352 = vmul.f32 %v351, %v247
        %v354 = vrot.slane %v352, 7
        %v356 = vadd.f32 %v349, %v354
        %s357 = sld [smem:[#allocation2 + $0x21]]
        %v358 = vstv %s357
        %v359 = vmul.f32 %v358, %v248
        %v360 = vadd.f32 %v356, %v359
        %s361 = sld [smem:[#allocation2 + $0x2]]
        %v362 = vstv %s361
        %v363 = vmul.f32 %v362, %v247
        %s364 = sld [smem:[#allocation2 + $0x6]]
        %v365 = vstv %s364
        %v366 = vmul.f32 %v365, %v247
        %v368 = vrot.slane %v366, 1
        %v370 = vadd.f32 %v363, %v368
        %s371 = sld [smem:[#allocation2 + $0xa]]
        %v372 = vstv %s371
        %v373 = vmul.f32 %v372, %v247
        %v375 = vrot.slane %v373, 2
        %v377 = vadd.f32 %v370, %v375
        %s378 = sld [smem:[#allocation2 + $0xe]]
        %v379 = vstv %s378
        %v380 = vmul.f32 %v379, %v247
        %v382 = vrot.slane %v380, 3
        %v384 = vadd.f32 %v377, %v382
        %s385 = sld [smem:[#allocation2 + $0x12]]
        %v386 = vstv %s385
        %v387 = vmul.f32 %v386, %v247
        %v389 = vrot.slane %v387, 4
        %v391 = vadd.f32 %v384, %v389
        %s392 = sld [smem:[#allocation2 + $0x16]]
        %v393 = vstv %s392
        %v394 = vmul.f32 %v393, %v247
        %v396 = vrot.slane %v394, 5
        %v398 = vadd.f32 %v391, %v396
        %s399 = sld [smem:[#allocation2 + $0x1a]]
        %v400 = vstv %s399
        %v401 = vmul.f32 %v400, %v247
        %v403 = vrot.slane %v401, 6
        %v405 = vadd.f32 %v398, %v403
        %s406 = sld [smem:[#allocation2 + $0x1e]]
        %v407 = vstv %s406
        %v408 = vmul.f32 %v407, %v247
        %v410 = vrot.slane %v408, 7
        %v412 = vadd.f32 %v405, %v410
        %s413 = sld [smem:[#allocation2 + $0x22]]
        %v414 = vstv %s413
        %v415 = vmul.f32 %v414, %v248
        %v416 = vadd.f32 %v412, %v415
        %s417 = sld [smem:[#allocation2 + $0x3]]
        %v418 = vstv %s417
        %v419 = vmul.f32 %v418, %v247
        %s420 = sld [smem:[#allocation2 + $0x7]]
        %v421 = vstv %s420
        %v422 = vmul.f32 %v421, %v247
        %v424 = vrot.slane %v422, 1
        %v426 = vadd.f32 %v419, %v424
        %s427 = sld [smem:[#allocation2 + $0xb]]
        %v428 = vstv %s427
        %v429 = vmul.f32 %v428, %v247
        %v431 = vrot.slane %v429, 2
        %v433 = vadd.f32 %v426, %v431
        %s434 = sld [smem:[#allocation2 + $0xf]]
        %v435 = vstv %s434
        %v436 = vmul.f32 %v435, %v247
        %v438 = vrot.slane %v436, 3
        %v440 = vadd.f32 %v433, %v438
        %s441 = sld [smem:[#allocation2 + $0x13]]
        %v442 = vstv %s441
        %v443 = vmul.f32 %v442, %v247
        %v445 = vrot.slane %v443, 4
        %v447 = vadd.f32 %v440, %v445
        %s448 = sld [smem:[#allocation2 + $0x17]]
        %v449 = vstv %s448
        %v450 = vmul.f32 %v449, %v247
        %v452 = vrot.slane %v450, 5
        %v454 = vadd.f32 %v447, %v452
        %s455 = sld [smem:[#allocation2 + $0x1b]]
        %v456 = vstv %s455
        %v457 = vmul.f32 %v456, %v247
        %v459 = vrot.slane %v457, 6
        %v461 = vadd.f32 %v454, %v459
        %s462 = sld [smem:[#allocation2 + $0x1f]]
        %v463 = vstv %s462
        %v464 = vmul.f32 %v463, %v247
        %v466 = vrot.slane %v464, 7
        %v468 = vadd.f32 %v461, %v466
        %s469 = sld [smem:[#allocation2 + $0x23]]
        %v470 = vstv %s469
        %v471 = vmul.f32 %v470, %v248
        %v472 = vadd.f32 %v468, %v471
        %v474 = vrot.slane %v360, 7
        %v477 = vrot.slane %v416, 6
        %v480 = vrot.slane %v472, 5
        %vm482 = vcmask 1040384
        %v483 = vsel %vm482, %v304, %v474
        %vm484 = vcmask 1041408
        %v485 = vsel %vm484, %v483, %v477
        %vm486 = vcmask 1042432
        %v487 = vsel %vm486, %v485, %v480
        %vm488 = vcmask 1043456
        %v489 = vsel %vm488, %v487, 0.0
        %v490 = vld [vmem:[%s207] sm:$0xff]
        %v491 = vld [vmem:[%s207 + $0x8] sm:$0xff]
        %v492 = vld [vmem:[%s207 + $0x10] sm:$0xff]
        %v493 = vld [vmem:[%s207 + $0x18] sm:$0xff]
        %v494 = vld [vmem:[%s207 + $0x20] sm:$0xff]
        %v495 = vld [vmem:[%s207 + $0x28] sm:$0xff]
        %v496 = vld [vmem:[%s207 + $0x30] sm:$0xff]
        %v497 = vld [vmem:[%s207 + $0x38] sm:$0xff]
        %v498 = vld [vmem:[%s207 + $0x40] sm:$0xff]
        %v499 = vld [vmem:[%s207 + $0x48] sm:$0xff]
        %v500 = vld [vmem:[%s207 + $0x50] sm:$0xff]
        %v501 = vld [vmem:[%s207 + $0x58] sm:$0xff]
        %v502 = vld [vmem:[%s207 + $0x60] sm:$0xff]
        %v503 = vld [vmem:[%s207 + $0x68] sm:$0xff]
        %v504 = vld [vmem:[%s207 + $0x70] sm:$0xff]
        %v505 = vld [vmem:[%s207 + $0x78] sm:$0xff]
        %v506 = vand.u32 %v505, 4294901760
        %507 = vmatpush.msra.mxu0 %v506
        %v508 = vand.u32 %v504, 4294901760
        %509 = vmatpush.msra.mxu0 %v508
        %v510 = vand.u32 %v503, 4294901760
        %511 = vmatpush.msra.mxu0 %v510
        %v512 = vand.u32 %v502, 4294901760
        %513 = vmatpush.msra.mxu0 %v512
        %v514 = vand.u32 %v501, 4294901760
        %515 = vmatpush.msra.mxu0 %v514
        %v516 = vand.u32 %v500, 4294901760
        %517 = vmatpush.msra.mxu0 %v516
        %v518 = vand.u32 %v499, 4294901760
        %519 = vmatpush.msra.mxu0 %v518
        %v520 = vand.u32 %v498, 4294901760
        %521 = vmatpush.msra.mxu0 %v520
        %v522 = vand.u32 %v497, 4294901760
        %523 = vmatpush.msra.mxu0 %v522
        %v524 = vand.u32 %v496, 4294901760
        %525 = vmatpush.msra.mxu0 %v524
        %v526 = vand.u32 %v495, 4294901760
        %527 = vmatpush.msra.mxu0 %v526
        %v528 = vand.u32 %v494, 4294901760
        %529 = vmatpush.msra.mxu0 %v528
        %v530 = vand.u32 %v493, 4294901760
        %531 = vmatpush.msra.mxu0 %v530
        %v532 = vand.u32 %v492, 4294901760
        %533 = vmatpush.msra.mxu0 %v532
        %v534 = vand.u32 %v491, 4294901760
        %535 = vmatpush.msra.mxu0 %v534
        %v536 = vand.u32 %v490, 4294901760
        %537 = vmatpush.msra.mxu0 %v536
        %v538 = vand.u32 %v489, 4294901760
        %v539 = vsub.f32 %v489, %v538
        %v540 = vand.u32 %v539, 4294901760
        %v541 = vsub.f32 %v539, %v540
        %v542 = vand.u32 %v541, 4294901760
        %543 = vmatmul.f32.gmra.mxu0 %v542
        %v544 = vpop.f32.mrf.mxu0
        %v545 = vadd.f32 0.0, %v544
        %546 = vdwg.mxu0
        %v547 = vand.u32 %v505, 4294901760
        %v548 = vsub.f32 %v505, %v547
        %v549 = vand.u32 %v548, 4294901760
        %v550 = vsub.f32 %v548, %v549
        %v551 = vand.u32 %v550, 4294901760
        %552 = vmatpush.msra.mxu0 %v551
        %v553 = vand.u32 %v504, 4294901760
        %v554 = vsub.f32 %v504, %v553
        %v555 = vand.u32 %v554, 4294901760
        %v556 = vsub.f32 %v554, %v555
        %v557 = vand.u32 %v556, 4294901760
        %558 = vmatpush.msra.mxu0 %v557
        %v559 = vand.u32 %v503, 4294901760
        %v560 = vsub.f32 %v503, %v559
        %v561 = vand.u32 %v560, 4294901760
        %v562 = vsub.f32 %v560, %v561
        %v563 = vand.u32 %v562, 4294901760
        %564 = vmatpush.msra.mxu0 %v563
        %v565 = vand.u32 %v502, 4294901760
        %v566 = vsub.f32 %v502, %v565
        %v567 = vand.u32 %v566, 4294901760
        %v568 = vsub.f32 %v566, %v567
        %v569 = vand.u32 %v568, 4294901760
        %570 = vmatpush.msra.mxu0 %v569
        %v571 = vand.u32 %v501, 4294901760
        %v572 = vsub.f32 %v501, %v571
        %v573 = vand.u32 %v572, 4294901760
        %v574 = vsub.f32 %v572, %v573
        %v575 = vand.u32 %v574, 4294901760
        %576 = vmatpush.msra.mxu0 %v575
        %v577 = vand.u32 %v500, 4294901760
        %v578 = vsub.f32 %v500, %v577
        %v579 = vand.u32 %v578, 4294901760
        %v580 = vsub.f32 %v578, %v579
        %v581 = vand.u32 %v580, 4294901760
        %582 = vmatpush.msra.mxu0 %v581
        %v583 = vand.u32 %v499, 4294901760
        %v584 = vsub.f32 %v499, %v583
        %v585 = vand.u32 %v584, 4294901760
        %v586 = vsub.f32 %v584, %v585
        %v587 = vand.u32 %v586, 4294901760
        %588 = vmatpush.msra.mxu0 %v587
        %v589 = vand.u32 %v498, 4294901760
        %v590 = vsub.f32 %v498, %v589
        %v591 = vand.u32 %v590, 4294901760
        %v592 = vsub.f32 %v590, %v591
        %v593 = vand.u32 %v592, 4294901760
        %594 = vmatpush.msra.mxu0 %v593
        %v595 = vand.u32 %v497, 4294901760
        %v596 = vsub.f32 %v497, %v595
        %v597 = vand.u32 %v596, 4294901760
        %v598 = vsub.f32 %v596, %v597
        %v599 = vand.u32 %v598, 4294901760
        %600 = vmatpush.msra.mxu0 %v599
        %v601 = vand.u32 %v496, 4294901760
        %v602 = vsub.f32 %v496, %v601
        %v603 = vand.u32 %v602, 4294901760
        %v604 = vsub.f32 %v602, %v603
        %v605 = vand.u32 %v604, 4294901760
        %606 = vmatpush.msra.mxu0 %v605
        %v607 = vand.u32 %v495, 4294901760
        %v608 = vsub.f32 %v495, %v607
        %v609 = vand.u32 %v608, 4294901760
        %v610 = vsub.f32 %v608, %v609
        %v611 = vand.u32 %v610, 4294901760
        %612 = vmatpush.msra.mxu0 %v611
        %v613 = vand.u32 %v494, 4294901760
        %v614 = vsub.f32 %v494, %v613
        %v615 = vand.u32 %v614, 4294901760
        %v616 = vsub.f32 %v614, %v615
        %v617 = vand.u32 %v616, 4294901760
        %618 = vmatpush.msra.mxu0 %v617
        %v619 = vand.u32 %v493, 4294901760
        %v620 = vsub.f32 %v493, %v619
        %v621 = vand.u32 %v620, 4294901760
        %v622 = vsub.f32 %v620, %v621
        %v623 = vand.u32 %v622, 4294901760
        %624 = vmatpush.msra.mxu0 %v623
        %v625 = vand.u32 %v492, 4294901760
        %v626 = vsub.f32 %v492, %v625
        %v627 = vand.u32 %v626, 4294901760
        %v628 = vsub.f32 %v626, %v627
        %v629 = vand.u32 %v628, 4294901760
        %630 = vmatpush.msra.mxu0 %v629
        %v631 = vand.u32 %v491, 4294901760
        %v632 = vsub.f32 %v491, %v631
        %v633 = vand.u32 %v632, 4294901760
        %v634 = vsub.f32 %v632, %v633
        %v635 = vand.u32 %v634, 4294901760
        %636 = vmatpush.msra.mxu0 %v635
        %v637 = vand.u32 %v490, 4294901760
        %v638 = vsub.f32 %v490, %v637
        %v639 = vand.u32 %v638, 4294901760
        %v640 = vsub.f32 %v638, %v639
        %v641 = vand.u32 %v640, 4294901760
        %642 = vmatpush.msra.mxu0 %v641
        %v643 = vand.u32 %v489, 4294901760
        %644 = vmatmul.f32.gmra.mxu0 %v643
        %v645 = vpop.f32.mrf.mxu0
        %v646 = vadd.f32 %v545, %v645
        %647 = vdwg.mxu0
        %v648 = vand.u32 %v505, 4294901760
        %v649 = vsub.f32 %v505, %v648
        %650 = vmatpush.msra.mxu0 %v649
        %v651 = vand.u32 %v504, 4294901760
        %v652 = vsub.f32 %v504, %v651
        %653 = vmatpush.msra.mxu0 %v652
        %v654 = vand.u32 %v503, 4294901760
        %v655 = vsub.f32 %v503, %v654
        %656 = vmatpush.msra.mxu0 %v655
        %v657 = vand.u32 %v502, 4294901760
        %v658 = vsub.f32 %v502, %v657
        %659 = vmatpush.msra.mxu0 %v658
        %v660 = vand.u32 %v501, 4294901760
        %v661 = vsub.f32 %v501, %v660
        %662 = vmatpush.msra.mxu0 %v661
        %v663 = vand.u32 %v500, 4294901760
        %v664 = vsub.f32 %v500, %v663
        %665 = vmatpush.msra.mxu0 %v664
        %v666 = vand.u32 %v499, 4294901760
        %v667 = vsub.f32 %v499, %v666
        %668 = vmatpush.msra.mxu0 %v667
        %v669 = vand.u32 %v498, 4294901760
        %v670 = vsub.f32 %v498, %v669
        %671 = vmatpush.msra.mxu0 %v670
        %v672 = vand.u32 %v497, 4294901760
        %v673 = vsub.f32 %v497, %v672
        %674 = vmatpush.msra.mxu0 %v673
        %v675 = vand.u32 %v496, 4294901760
        %v676 = vsub.f32 %v496, %v675
        %677 = vmatpush.msra.mxu0 %v676
        %v678 = vand.u32 %v495, 4294901760
        %v679 = vsub.f32 %v495, %v678
        %680 = vmatpush.msra.mxu0 %v679
        %v681 = vand.u32 %v494, 4294901760
        %v682 = vsub.f32 %v494, %v681
        %683 = vmatpush.msra.mxu0 %v682
        %v684 = vand.u32 %v493, 4294901760
        %v685 = vsub.f32 %v493, %v684
        %686 = vmatpush.msra.mxu0 %v685
        %v687 = vand.u32 %v492, 4294901760
        %v688 = vsub.f32 %v492, %v687
        %689 = vmatpush.msra.mxu0 %v688
        %v690 = vand.u32 %v491, 4294901760
        %v691 = vsub.f32 %v491, %v690
        %692 = vmatpush.msra.mxu0 %v691
        %v693 = vand.u32 %v490, 4294901760
        %v694 = vsub.f32 %v490, %v693
        %695 = vmatpush.msra.mxu0 %v694
        %v696 = vand.u32 %v489, 4294901760
        %v697 = vsub.f32 %v489, %v696
        %698 = vmatmul.f32.gmra.mxu0 %v697
        %v699 = vpop.f32.mrf.mxu0
        %v700 = vadd.f32 %v646, %v699
        %701 = vdwg.mxu0
        %v702 = vand.u32 %v505, 4294901760
        %703 = vmatpush.msra.mxu0 %v702
        %v704 = vand.u32 %v504, 4294901760
        %705 = vmatpush.msra.mxu0 %v704
        %v706 = vand.u32 %v503, 4294901760
        %707 = vmatpush.msra.mxu0 %v706
        %v708 = vand.u32 %v502, 4294901760
        %709 = vmatpush.msra.mxu0 %v708
        %v710 = vand.u32 %v501, 4294901760
        %711 = vmatpush.msra.mxu0 %v710
        %v712 = vand.u32 %v500, 4294901760
        %713 = vmatpush.msra.mxu0 %v712
        %v714 = vand.u32 %v499, 4294901760
        %715 = vmatpush.msra.mxu0 %v714
        %v716 = vand.u32 %v498, 4294901760
        %717 = vmatpush.msra.mxu0 %v716
        %v718 = vand.u32 %v497, 4294901760
        %719 = vmatpush.msra.mxu0 %v718
        %v720 = vand.u32 %v496, 4294901760
        %721 = vmatpush.msra.mxu0 %v720
        %v722 = vand.u32 %v495, 4294901760
        %723 = vmatpush.msra.mxu0 %v722
        %v724 = vand.u32 %v494, 4294901760
        %725 = vmatpush.msra.mxu0 %v724
        %v726 = vand.u32 %v493, 4294901760
        %727 = vmatpush.msra.mxu0 %v726
        %v728 = vand.u32 %v492, 4294901760
        %729 = vmatpush.msra.mxu0 %v728
        %v730 = vand.u32 %v491, 4294901760
        %731 = vmatpush.msra.mxu0 %v730
        %v732 = vand.u32 %v490, 4294901760
        %733 = vmatpush.msra.mxu0 %v732
        %v734 = vand.u32 %v489, 4294901760
        %v735 = vsub.f32 %v489, %v734
        %v736 = vand.u32 %v735, 4294901760
        %737 = vmatmul.f32.gmra.mxu0 %v736
        %v738 = vpop.f32.mrf.mxu0
        %v739 = vadd.f32 %v700, %v738
        %740 = vdwg.mxu0
        %v741 = vand.u32 %v505, 4294901760
        %v742 = vsub.f32 %v505, %v741
        %v743 = vand.u32 %v742, 4294901760
        %744 = vmatpush.msra.mxu0 %v743
        %v745 = vand.u32 %v504, 4294901760
        %v746 = vsub.f32 %v504, %v745
        %v747 = vand.u32 %v746, 4294901760
        %748 = vmatpush.msra.mxu0 %v747
        %v749 = vand.u32 %v503, 4294901760
        %v750 = vsub.f32 %v503, %v749
        %v751 = vand.u32 %v750, 4294901760
        %752 = vmatpush.msra.mxu0 %v751
        %v753 = vand.u32 %v502, 4294901760
        %v754 = vsub.f32 %v502, %v753
        %v755 = vand.u32 %v754, 4294901760
        %756 = vmatpush.msra.mxu0 %v755
        %v757 = vand.u32 %v501, 4294901760
        %v758 = vsub.f32 %v501, %v757
        %v759 = vand.u32 %v758, 4294901760
        %760 = vmatpush.msra.mxu0 %v759
        %v761 = vand.u32 %v500, 4294901760
        %v762 = vsub.f32 %v500, %v761
        %v763 = vand.u32 %v762, 4294901760
        %764 = vmatpush.msra.mxu0 %v763
        %v765 = vand.u32 %v499, 4294901760
        %v766 = vsub.f32 %v499, %v765
        %v767 = vand.u32 %v766, 4294901760
        %768 = vmatpush.msra.mxu0 %v767
        %v769 = vand.u32 %v498, 4294901760
        %v770 = vsub.f32 %v498, %v769
        %v771 = vand.u32 %v770, 4294901760
        %772 = vmatpush.msra.mxu0 %v771
        %v773 = vand.u32 %v497, 4294901760
        %v774 = vsub.f32 %v497, %v773
        %v775 = vand.u32 %v774, 4294901760
        %776 = vmatpush.msra.mxu0 %v775
        %v777 = vand.u32 %v496, 4294901760
        %v778 = vsub.f32 %v496, %v777
        %v779 = vand.u32 %v778, 4294901760
        %780 = vmatpush.msra.mxu0 %v779
        %v781 = vand.u32 %v495, 4294901760
        %v782 = vsub.f32 %v495, %v781
        %v783 = vand.u32 %v782, 4294901760
        %784 = vmatpush.msra.mxu0 %v783
        %v785 = vand.u32 %v494, 4294901760
        %v786 = vsub.f32 %v494, %v785
        %v787 = vand.u32 %v786, 4294901760
        %788 = vmatpush.msra.mxu0 %v787
        %v789 = vand.u32 %v493, 4294901760
        %v790 = vsub.f32 %v493, %v789
        %v791 = vand.u32 %v790, 4294901760
        %792 = vmatpush.msra.mxu0 %v791
        %v793 = vand.u32 %v492, 4294901760
        %v794 = vsub.f32 %v492, %v793
        %v795 = vand.u32 %v794, 4294901760
        %796 = vmatpush.msra.mxu0 %v795
        %v797 = vand.u32 %v491, 4294901760
        %v798 = vsub.f32 %v491, %v797
        %v799 = vand.u32 %v798, 4294901760
        %800 = vmatpush.msra.mxu0 %v799
        %v801 = vand.u32 %v490, 4294901760
        %v802 = vsub.f32 %v490, %v801
        %v803 = vand.u32 %v802, 4294901760
        %804 = vmatpush.msra.mxu0 %v803
        %v805 = vand.u32 %v489, 4294901760
        %806 = vmatmul.f32.gmra.mxu0 %v805
        %v807 = vpop.f32.mrf.mxu0
        %v808 = vadd.f32 %v739, %v807
        %809 = vdwg.mxu0
        %v810 = vand.u32 %v505, 4294901760
        %811 = vmatpush.msra.mxu0 %v810
        %v812 = vand.u32 %v504, 4294901760
        %813 = vmatpush.msra.mxu0 %v812
        %v814 = vand.u32 %v503, 4294901760
        %815 = vmatpush.msra.mxu0 %v814
        %v816 = vand.u32 %v502, 4294901760
        %817 = vmatpush.msra.mxu0 %v816
        %v818 = vand.u32 %v501, 4294901760
        %819 = vmatpush.msra.mxu0 %v818
        %v820 = vand.u32 %v500, 4294901760
        %821 = vmatpush.msra.mxu0 %v820
        %v822 = vand.u32 %v499, 4294901760
        %823 = vmatpush.msra.mxu0 %v822
        %v824 = vand.u32 %v498, 4294901760
        %825 = vmatpush.msra.mxu0 %v824
        %v826 = vand.u32 %v497, 4294901760
        %827 = vmatpush.msra.mxu0 %v826
        %v828 = vand.u32 %v496, 4294901760
        %829 = vmatpush.msra.mxu0 %v828
        %v830 = vand.u32 %v495, 4294901760
        %831 = vmatpush.msra.mxu0 %v830
        %v832 = vand.u32 %v494, 4294901760
        %833 = vmatpush.msra.mxu0 %v832
        %v834 = vand.u32 %v493, 4294901760
        %835 = vmatpush.msra.mxu0 %v834
        %v836 = vand.u32 %v492, 4294901760
        %837 = vmatpush.msra.mxu0 %v836
        %v838 = vand.u32 %v491, 4294901760
        %839 = vmatpush.msra.mxu0 %v838
        %v840 = vand.u32 %v490, 4294901760
        %841 = vmatpush.msra.mxu0 %v840
        %v842 = vand.u32 %v489, 4294901760
        %843 = vmatmul.f32.gmra.mxu0 %v842
        %v844 = vpop.f32.mrf.mxu0
        %v845 = vadd.f32 %v808, %v844
        %846 = vdwg.mxu0
        %s847 = sld [smem:[#allocation2 + $0x24]]
        %v848 = vstv %s847
        %v849 = vadd.f32 %v845, %v848
        %v850 = vtanh.pop %v849
        %s851 = sld [smem:[#allocation2 + $0x25]]
        %v852 = vstv %s851
        %v853 = vadd.f32 %v845, %v852
        %v854 = vtanh.pop %v853
        %s855 = sld [smem:[#allocation2 + $0x26]]
        %v856 = vstv %s855
        %v857 = vadd.f32 %v845, %v856
        %v858 = vtanh.pop %v857
        %s859 = sld [smem:[#allocation2 + $0x27]]
        %v860 = vstv %s859
        %v861 = vadd.f32 %v845, %v860
        %v862 = vtanh.pop %v861
        %v863 = vsel %vm482, %v850, %v854
        %v864 = vsel %vm484, %v863, %v858
        %v865 = vsel %vm486, %v864, %v862
        %v866 = vsel %vm488, %v865, 0.0
        %s867 = sld [smem:[#allocation2 + $0x28]]
        %v868 = vstv %s867
        %v869 = vmul.f32 %v868, %v866
        %s870 = sld [smem:[#allocation2 + $0x2c]]
        %v871 = vstv %s870
        %v872 = vmul.f32 %v871, %v866
        %v874 = vrot.slane %v872, 1
        %v876 = vadd.f32 %v869, %v874
        %s877 = sld [smem:[#allocation2 + $0x30]]
        %v878 = vstv %s877
        %v879 = vmul.f32 %v878, %v866
        %v881 = vrot.slane %v879, 2
        %v883 = vadd.f32 %v876, %v881
        %s884 = sld [smem:[#allocation2 + $0x34]]
        %v885 = vstv %s884
        %v886 = vmul.f32 %v885, %v866
        %v888 = vrot.slane %v886, 3
        %v890 = vadd.f32 %v883, %v888
        %s891 = sld [smem:[#allocation2 + $0x29]]
        %v892 = vstv %s891
        %v893 = vmul.f32 %v892, %v866
        %s894 = sld [smem:[#allocation2 + $0x2d]]
        %v895 = vstv %s894
        %v896 = vmul.f32 %v895, %v866
        %v898 = vrot.slane %v896, 1
        %v900 = vadd.f32 %v893, %v898
        %s901 = sld [smem:[#allocation2 + $0x31]]
        %v902 = vstv %s901
        %v903 = vmul.f32 %v902, %v866
        %v905 = vrot.slane %v903, 2
        %v907 = vadd.f32 %v900, %v905
        %s908 = sld [smem:[#allocation2 + $0x35]]
        %v909 = vstv %s908
        %v910 = vmul.f32 %v909, %v866
        %v912 = vrot.slane %v910, 3
        %v914 = vadd.f32 %v907, %v912
        %s915 = sld [smem:[#allocation2 + $0x2a]]
        %v916 = vstv %s915
        %v917 = vmul.f32 %v916, %v866
        %s918 = sld [smem:[#allocation2 + $0x2e]]
        %v919 = vstv %s918
        %v920 = vmul.f32 %v919, %v866
        %v922 = vrot.slane %v920, 1
        %v924 = vadd.f32 %v917, %v922
        %s925 = sld [smem:[#allocation2 + $0x32]]
        %v926 = vstv %s925
        %v927 = vmul.f32 %v926, %v866
        %v929 = vrot.slane %v927, 2
        %v931 = vadd.f32 %v924, %v929
        %s932 = sld [smem:[#allocation2 + $0x36]]
        %v933 = vstv %s932
        %v934 = vmul.f32 %v933, %v866
        %v936 = vrot.slane %v934, 3
        %v938 = vadd.f32 %v931, %v936
        %s939 = sld [smem:[#allocation2 + $0x2b]]
        %v940 = vstv %s939
        %v941 = vmul.f32 %v940, %v866
        %s942 = sld [smem:[#allocation2 + $0x2f]]
        %v943 = vstv %s942
        %v944 = vmul.f32 %v943, %v866
        %v946 = vrot.slane %v944, 1
        %v948 = vadd.f32 %v941, %v946
        %s949 = sld [smem:[#allocation2 + $0x33]]
        %v950 = vstv %s949
        %v951 = vmul.f32 %v950, %v866
        %v953 = vrot.slane %v951, 2
        %v955 = vadd.f32 %v948, %v953
        %s956 = sld [smem:[#allocation2 + $0x37]]
        %v957 = vstv %s956
        %v958 = vmul.f32 %v957, %v866
        %v960 = vrot.slane %v958, 3
        %v962 = vadd.f32 %v955, %v960
        %v964 = vrot.slane %v914, 7
        %v967 = vrot.slane %v938, 6
        %v970 = vrot.slane %v962, 5
        %v972 = vsel %vm482, %v890, %v964
        %v973 = vsel %vm484, %v972, %v967
        %v974 = vsel %vm486, %v973, %v970
        %v975 = vsel %vm488, %v974, 0.0
        %v976 = vand.u32 %v505, 4294901760
        %977 = vmatpush.msra.mxu0 %v976
        %v978 = vand.u32 %v504, 4294901760
        %979 = vmatpush.msra.mxu0 %v978
        %v980 = vand.u32 %v503, 4294901760
        %981 = vmatpush.msra.mxu0 %v980
        %v982 = vand.u32 %v502, 4294901760
        %983 = vmatpush.msra.mxu0 %v982
        %v984 = vand.u32 %v501, 4294901760
        %985 = vmatpush.msra.mxu0 %v984
        %v986 = vand.u32 %v500, 4294901760
        %987 = vmatpush.msra.mxu0 %v986
        %v988 = vand.u32 %v499, 4294901760
        %989 = vmatpush.msra.mxu0 %v988
        %v990 = vand.u32 %v498, 4294901760
        %991 = vmatpush.msra.mxu0 %v990
        %v992 = vand.u32 %v497, 4294901760
        %993 = vmatpush.msra.mxu0 %v992
        %v994 = vand.u32 %v496, 4294901760
        %995 = vmatpush.msra.mxu0 %v994
        %v996 = vand.u32 %v495, 4294901760
        %997 = vmatpush.msra.mxu0 %v996
        %v998 = vand.u32 %v494, 4294901760
        %999 = vmatpush.msra.mxu0 %v998
        %v1000 = vand.u32 %v493, 4294901760
        %1001 = vmatpush.msra.mxu0 %v1000
        %v1002 = vand.u32 %v492, 4294901760
        %1003 = vmatpush.msra.mxu0 %v1002
        %v1004 = vand.u32 %v491, 4294901760
        %1005 = vmatpush.msra.mxu0 %v1004
        %v1006 = vand.u32 %v490, 4294901760
        %1007 = vmatpush.msra.mxu0 %v1006
        %v1008 = vand.u32 %v975, 4294901760
        %v1009 = vsub.f32 %v975, %v1008
        %v1010 = vand.u32 %v1009, 4294901760
        %v1011 = vsub.f32 %v1009, %v1010
        %v1012 = vand.u32 %v1011, 4294901760
        %1013 = vmatmul.f32.gmra.mxu0 %v1012
        %v1014 = vpop.f32.mrf.mxu0
        %v1015 = vadd.f32 0.0, %v1014
        %1016 = vdwg.mxu0
        %v1017 = vand.u32 %v505, 4294901760
        %v1018 = vsub.f32 %v505, %v1017
        %v1019 = vand.u32 %v1018, 4294901760
        %v1020 = vsub.f32 %v1018, %v1019
        %v1021 = vand.u32 %v1020, 4294901760
        %1022 = vmatpush.msra.mxu0 %v1021
        %v1023 = vand.u32 %v504, 4294901760
        %v1024 = vsub.f32 %v504, %v1023
        %v1025 = vand.u32 %v1024, 4294901760
        %v1026 = vsub.f32 %v1024, %v1025
        %v1027 = vand.u32 %v1026, 4294901760
        %1028 = vmatpush.msra.mxu0 %v1027
        %v1029 = vand.u32 %v503, 4294901760
        %v1030 = vsub.f32 %v503, %v1029
        %v1031 = vand.u32 %v1030, 4294901760
        %v1032 = vsub.f32 %v1030, %v1031
        %v1033 = vand.u32 %v1032, 4294901760
        %1034 = vmatpush.msra.mxu0 %v1033
        %v1035 = vand.u32 %v502, 4294901760
        %v1036 = vsub.f32 %v502, %v1035
        %v1037 = vand.u32 %v1036, 4294901760
        %v1038 = vsub.f32 %v1036, %v1037
        %v1039 = vand.u32 %v1038, 4294901760
        %1040 = vmatpush.msra.mxu0 %v1039
        %v1041 = vand.u32 %v501, 4294901760
        %v1042 = vsub.f32 %v501, %v1041
        %v1043 = vand.u32 %v1042, 4294901760
        %v1044 = vsub.f32 %v1042, %v1043
        %v1045 = vand.u32 %v1044, 4294901760
        %1046 = vmatpush.msra.mxu0 %v1045
        %v1047 = vand.u32 %v500, 4294901760
        %v1048 = vsub.f32 %v500, %v1047
        %v1049 = vand.u32 %v1048, 4294901760
        %v1050 = vsub.f32 %v1048, %v1049
        %v1051 = vand.u32 %v1050, 4294901760
        %1052 = vmatpush.msra.mxu0 %v1051
        %v1053 = vand.u32 %v499, 4294901760
        %v1054 = vsub.f32 %v499, %v1053
        %v1055 = vand.u32 %v1054, 4294901760
        %v1056 = vsub.f32 %v1054, %v1055
        %v1057 = vand.u32 %v1056, 4294901760
        %1058 = vmatpush.msra.mxu0 %v1057
        %v1059 = vand.u32 %v498, 4294901760
        %v1060 = vsub.f32 %v498, %v1059
        %v1061 = vand.u32 %v1060, 4294901760
        %v1062 = vsub.f32 %v1060, %v1061
        %v1063 = vand.u32 %v1062, 4294901760
        %1064 = vmatpush.msra.mxu0 %v1063
        %v1065 = vand.u32 %v497, 4294901760
        %v1066 = vsub.f32 %v497, %v1065
        %v1067 = vand.u32 %v1066, 4294901760
        %v1068 = vsub.f32 %v1066, %v1067
        %v1069 = vand.u32 %v1068, 4294901760
        %1070 = vmatpush.msra.mxu0 %v1069
        %v1071 = vand.u32 %v496, 4294901760
        %v1072 = vsub.f32 %v496, %v1071
        %v1073 = vand.u32 %v1072, 4294901760
        %v1074 = vsub.f32 %v1072, %v1073
        %v1075 = vand.u32 %v1074, 4294901760
        %1076 = vmatpush.msra.mxu0 %v1075
        %v1077 = vand.u32 %v495, 4294901760
        %v1078 = vsub.f32 %v495, %v1077
        %v1079 = vand.u32 %v1078, 4294901760
        %v1080 = vsub.f32 %v1078, %v1079
        %v1081 = vand.u32 %v1080, 4294901760
        %1082 = vmatpush.msra.mxu0 %v1081
        %v1083 = vand.u32 %v494, 4294901760
        %v1084 = vsub.f32 %v494, %v1083
        %v1085 = vand.u32 %v1084, 4294901760
        %v1086 = vsub.f32 %v1084, %v1085
        %v1087 = vand.u32 %v1086, 4294901760
        %1088 = vmatpush.msra.mxu0 %v1087
        %v1089 = vand.u32 %v493, 4294901760
        %v1090 = vsub.f32 %v493, %v1089
        %v1091 = vand.u32 %v1090, 4294901760
        %v1092 = vsub.f32 %v1090, %v1091
        %v1093 = vand.u32 %v1092, 4294901760
        %1094 = vmatpush.msra.mxu0 %v1093
        %v1095 = vand.u32 %v492, 4294901760
        %v1096 = vsub.f32 %v492, %v1095
        %v1097 = vand.u32 %v1096, 4294901760
        %v1098 = vsub.f32 %v1096, %v1097
        %v1099 = vand.u32 %v1098, 4294901760
        %1100 = vmatpush.msra.mxu0 %v1099
        %v1101 = vand.u32 %v491, 4294901760
        %v1102 = vsub.f32 %v491, %v1101
        %v1103 = vand.u32 %v1102, 4294901760
        %v1104 = vsub.f32 %v1102, %v1103
        %v1105 = vand.u32 %v1104, 4294901760
        %1106 = vmatpush.msra.mxu0 %v1105
        %v1107 = vand.u32 %v490, 4294901760
        %v1108 = vsub.f32 %v490, %v1107
        %v1109 = vand.u32 %v1108, 4294901760
        %v1110 = vsub.f32 %v1108, %v1109
        %v1111 = vand.u32 %v1110, 4294901760
        %1112 = vmatpush.msra.mxu0 %v1111
        %v1113 = vand.u32 %v975, 4294901760
        %1114 = vmatmul.f32.gmra.mxu0 %v1113
        %v1115 = vpop.f32.mrf.mxu0
        %v1116 = vadd.f32 %v1015, %v1115
        %1117 = vdwg.mxu0
        %v1118 = vand.u32 %v505, 4294901760
        %v1119 = vsub.f32 %v505, %v1118
        %1120 = vmatpush.msra.mxu0 %v1119
        %v1121 = vand.u32 %v504, 4294901760
        %v1122 = vsub.f32 %v504, %v1121
        %1123 = vmatpush.msra.mxu0 %v1122
        %v1124 = vand.u32 %v503, 4294901760
        %v1125 = vsub.f32 %v503, %v1124
        %1126 = vmatpush.msra.mxu0 %v1125
        %v1127 = vand.u32 %v502, 4294901760
        %v1128 = vsub.f32 %v502, %v1127
        %1129 = vmatpush.msra.mxu0 %v1128
        %v1130 = vand.u32 %v501, 4294901760
        %v1131 = vsub.f32 %v501, %v1130
        %1132 = vmatpush.msra.mxu0 %v1131
        %v1133 = vand.u32 %v500, 4294901760
        %v1134 = vsub.f32 %v500, %v1133
        %1135 = vmatpush.msra.mxu0 %v1134
        %v1136 = vand.u32 %v499, 4294901760
        %v1137 = vsub.f32 %v499, %v1136
        %1138 = vmatpush.msra.mxu0 %v1137
        %v1139 = vand.u32 %v498, 4294901760
        %v1140 = vsub.f32 %v498, %v1139
        %1141 = vmatpush.msra.mxu0 %v1140
        %v1142 = vand.u32 %v497, 4294901760
        %v1143 = vsub.f32 %v497, %v1142
        %1144 = vmatpush.msra.mxu0 %v1143
        %v1145 = vand.u32 %v496, 4294901760
        %v1146 = vsub.f32 %v496, %v1145
        %1147 = vmatpush.msra.mxu0 %v1146
        %v1148 = vand.u32 %v495, 4294901760
        %v1149 = vsub.f32 %v495, %v1148
        %1150 = vmatpush.msra.mxu0 %v1149
        %v1151 = vand.u32 %v494, 4294901760
        %v1152 = vsub.f32 %v494, %v1151
        %1153 = vmatpush.msra.mxu0 %v1152
        %v1154 = vand.u32 %v493, 4294901760
        %v1155 = vsub.f32 %v493, %v1154
        %1156 = vmatpush.msra.mxu0 %v1155
        %v1157 = vand.u32 %v492, 4294901760
        %v1158 = vsub.f32 %v492, %v1157
        %1159 = vmatpush.msra.mxu0 %v1158
        %v1160 = vand.u32 %v491, 4294901760
        %v1161 = vsub.f32 %v491, %v1160
        %1162 = vmatpush.msra.mxu0 %v1161
        %v1163 = vand.u32 %v490, 4294901760
        %v1164 = vsub.f32 %v490, %v1163
        %1165 = vmatpush.msra.mxu0 %v1164
        %v1166 = vand.u32 %v975, 4294901760
        %v1167 = vsub.f32 %v975, %v1166
        %1168 = vmatmul.f32.gmra.mxu0 %v1167
        %v1169 = vpop.f32.mrf.mxu0
        %v1170 = vadd.f32 %v1116, %v1169
        %1171 = vdwg.mxu0
        %v1172 = vand.u32 %v505, 4294901760
        %1173 = vmatpush.msra.mxu0 %v1172
        %v1174 = vand.u32 %v504, 4294901760
        %1175 = vmatpush.msra.mxu0 %v1174
        %v1176 = vand.u32 %v503, 4294901760
        %1177 = vmatpush.msra.mxu0 %v1176
        %v1178 = vand.u32 %v502, 4294901760
        %1179 = vmatpush.msra.mxu0 %v1178
        %v1180 = vand.u32 %v501, 4294901760
        %1181 = vmatpush.msra.mxu0 %v1180
        %v1182 = vand.u32 %v500, 4294901760
        %1183 = vmatpush.msra.mxu0 %v1182
        %v1184 = vand.u32 %v499, 4294901760
        %1185 = vmatpush.msra.mxu0 %v1184
        %v1186 = vand.u32 %v498, 4294901760
        %1187 = vmatpush.msra.mxu0 %v1186
        %v1188 = vand.u32 %v497, 4294901760
        %1189 = vmatpush.msra.mxu0 %v1188
        %v1190 = vand.u32 %v496, 4294901760
        %1191 = vmatpush.msra.mxu0 %v1190
        %v1192 = vand.u32 %v495, 4294901760
        %1193 = vmatpush.msra.mxu0 %v1192
        %v1194 = vand.u32 %v494, 4294901760
        %1195 = vmatpush.msra.mxu0 %v1194
        %v1196 = vand.u32 %v493, 4294901760
        %1197 = vmatpush.msra.mxu0 %v1196
        %v1198 = vand.u32 %v492, 4294901760
        %1199 = vmatpush.msra.mxu0 %v1198
        %v1200 = vand.u32 %v491, 4294901760
        %1201 = vmatpush.msra.mxu0 %v1200
        %v1202 = vand.u32 %v490, 4294901760
        %1203 = vmatpush.msra.mxu0 %v1202
        %v1204 = vand.u32 %v975, 4294901760
        %v1205 = vsub.f32 %v975, %v1204
        %v1206 = vand.u32 %v1205, 4294901760
        %1207 = vmatmul.f32.gmra.mxu0 %v1206
        %v1208 = vpop.f32.mrf.mxu0
        %v1209 = vadd.f32 %v1170, %v1208
        %1210 = vdwg.mxu0
        %v1211 = vand.u32 %v505, 4294901760
        %v1212 = vsub.f32 %v505, %v1211
        %v1213 = vand.u32 %v1212, 4294901760
        %1214 = vmatpush.msra.mxu0 %v1213
        %v1215 = vand.u32 %v504, 4294901760
        %v1216 = vsub.f32 %v504, %v1215
        %v1217 = vand.u32 %v1216, 4294901760
        %1218 = vmatpush.msra.mxu0 %v1217
        %v1219 = vand.u32 %v503, 4294901760
        %v1220 = vsub.f32 %v503, %v1219
        %v1221 = vand.u32 %v1220, 4294901760
        %1222 = vmatpush.msra.mxu0 %v1221
        %v1223 = vand.u32 %v502, 4294901760
        %v1224 = vsub.f32 %v502, %v1223
        %v1225 = vand.u32 %v1224, 4294901760
        %1226 = vmatpush.msra.mxu0 %v1225
        %v1227 = vand.u32 %v501, 4294901760
        %v1228 = vsub.f32 %v501, %v1227
        %v1229 = vand.u32 %v1228, 4294901760
        %1230 = vmatpush.msra.mxu0 %v1229
        %v1231 = vand.u32 %v500, 4294901760
        %v1232 = vsub.f32 %v500, %v1231
        %v1233 = vand.u32 %v1232, 4294901760
        %1234 = vmatpush.msra.mxu0 %v1233
        %v1235 = vand.u32 %v499, 4294901760
        %v1236 = vsub.f32 %v499, %v1235
        %v1237 = vand.u32 %v1236, 4294901760
        %1238 = vmatpush.msra.mxu0 %v1237
        %v1239 = vand.u32 %v498, 4294901760
        %v1240 = vsub.f32 %v498, %v1239
        %v1241 = vand.u32 %v1240, 4294901760
        %1242 = vmatpush.msra.mxu0 %v1241
        %v1243 = vand.u32 %v497, 4294901760
        %v1244 = vsub.f32 %v497, %v1243
        %v1245 = vand.u32 %v1244, 4294901760
        %1246 = vmatpush.msra.mxu0 %v1245
        %v1247 = vand.u32 %v496, 4294901760
        %v1248 = vsub.f32 %v496, %v1247
        %v1249 = vand.u32 %v1248, 4294901760
        %1250 = vmatpush.msra.mxu0 %v1249
        %v1251 = vand.u32 %v495, 4294901760
        %v1252 = vsub.f32 %v495, %v1251
        %v1253 = vand.u32 %v1252, 4294901760
        %1254 = vmatpush.msra.mxu0 %v1253
        %v1255 = vand.u32 %v494, 4294901760
        %v1256 = vsub.f32 %v494, %v1255
        %v1257 = vand.u32 %v1256, 4294901760
        %1258 = vmatpush.msra.mxu0 %v1257
        %v1259 = vand.u32 %v493, 4294901760
        %v1260 = vsub.f32 %v493, %v1259
        %v1261 = vand.u32 %v1260, 4294901760
        %1262 = vmatpush.msra.mxu0 %v1261
        %v1263 = vand.u32 %v492, 4294901760
        %v1264 = vsub.f32 %v492, %v1263
        %v1265 = vand.u32 %v1264, 4294901760
        %1266 = vmatpush.msra.mxu0 %v1265
        %v1267 = vand.u32 %v491, 4294901760
        %v1268 = vsub.f32 %v491, %v1267
        %v1269 = vand.u32 %v1268, 4294901760
        %1270 = vmatpush.msra.mxu0 %v1269
        %v1271 = vand.u32 %v490, 4294901760
        %v1272 = vsub.f32 %v490, %v1271
        %v1273 = vand.u32 %v1272, 4294901760
        %1274 = vmatpush.msra.mxu0 %v1273
        %v1275 = vand.u32 %v975, 4294901760
        %1276 = vmatmul.f32.gmra.mxu0 %v1275
        %v1277 = vpop.f32.mrf.mxu0
        %v1278 = vadd.f32 %v1209, %v1277
        %1279 = vdwg.mxu0
        %v1280 = vand.u32 %v505, 4294901760
        %1281 = vmatpush.msra.mxu0 %v1280
        %v1282 = vand.u32 %v504, 4294901760
        %1283 = vmatpush.msra.mxu0 %v1282
        %v1284 = vand.u32 %v503, 4294901760
        %1285 = vmatpush.msra.mxu0 %v1284
        %v1286 = vand.u32 %v502, 4294901760
        %1287 = vmatpush.msra.mxu0 %v1286
        %v1288 = vand.u32 %v501, 4294901760
        %1289 = vmatpush.msra.mxu0 %v1288
        %v1290 = vand.u32 %v500, 4294901760
        %1291 = vmatpush.msra.mxu0 %v1290
        %v1292 = vand.u32 %v499, 4294901760
        %1293 = vmatpush.msra.mxu0 %v1292
        %v1294 = vand.u32 %v498, 4294901760
        %1295 = vmatpush.msra.mxu0 %v1294
        %v1296 = vand.u32 %v497, 4294901760
        %1297 = vmatpush.msra.mxu0 %v1296
        %v1298 = vand.u32 %v496, 4294901760
        %1299 = vmatpush.msra.mxu0 %v1298
        %v1300 = vand.u32 %v495, 4294901760
        %1301 = vmatpush.msra.mxu0 %v1300
        %v1302 = vand.u32 %v494, 4294901760
        %1303 = vmatpush.msra.mxu0 %v1302
        %v1304 = vand.u32 %v493, 4294901760
        %1305 = vmatpush.msra.mxu0 %v1304
        %v1306 = vand.u32 %v492, 4294901760
        %1307 = vmatpush.msra.mxu0 %v1306
        %v1308 = vand.u32 %v491, 4294901760
        %1309 = vmatpush.msra.mxu0 %v1308
        %v1310 = vand.u32 %v490, 4294901760
        %1311 = vmatpush.msra.mxu0 %v1310
        %v1312 = vand.u32 %v975, 4294901760
        %1313 = vmatmul.f32.gmra.mxu0 %v1312
        %v1314 = vpop.f32.mrf.mxu0
        %v1315 = vadd.f32 %v1278, %v1314
        %1316 = vdwg.mxu0
        %s1317 = sld [smem:[#allocation2 + $0x38]]
        %v1318 = vstv %s1317
        %v1319 = vadd.f32 %v1315, %v1318
        %v1320 = vtanh.pop %v1319
        %s1321 = sld [smem:[#allocation2 + $0x39]]
        %v1322 = vstv %s1321
        %v1323 = vadd.f32 %v1315, %v1322
        %v1324 = vtanh.pop %v1323
        %s1325 = sld [smem:[#allocation2 + $0x3a]]
        %v1326 = vstv %s1325
        %v1327 = vadd.f32 %v1315, %v1326
        %v1328 = vtanh.pop %v1327
        %s1329 = sld [smem:[#allocation2 + $0x3b]]
        %v1330 = vstv %s1329
        %v1331 = vadd.f32 %v1315, %v1330
        %v1332 = vtanh.pop %v1331
        %v1333 = vsel %vm482, %v1320, %v1324
        %v1334 = vsel %vm484, %v1333, %v1328
        %v1335 = vsel %vm486, %v1334, %v1332
        %v1336 = vsel %vm488, %v1335, 0.0
        %s1337 = sld [smem:[#allocation2 + $0x3c]]
        %v1338 = vstv %s1337
        %v1339 = vmul.f32 %v1338, %v1336
        %s1340 = sld [smem:[#allocation2 + $0x3e]]
        %v1341 = vstv %s1340
        %v1342 = vmul.f32 %v1341, %v1336
        %v1344 = vrot.slane %v1342, 1
        %v1346 = vadd.f32 %v1339, %v1344
        %s1347 = sld [smem:[#allocation2 + $0x40]]
        %v1348 = vstv %s1347
        %v1349 = vmul.f32 %v1348, %v1336
        %v1351 = vrot.slane %v1349, 2
        %v1353 = vadd.f32 %v1346, %v1351
        %s1354 = sld [smem:[#allocation2 + $0x42]]
        %v1355 = vstv %s1354
        %v1356 = vmul.f32 %v1355, %v1336
        %v1358 = vrot.slane %v1356, 3
        %v1360 = vadd.f32 %v1353, %v1358
        %s1361 = sld [smem:[#allocation2 + $0x3d]]
        %v1362 = vstv %s1361
        %v1363 = vmul.f32 %v1362, %v1336
        %s1364 = sld [smem:[#allocation2 + $0x3f]]
        %v1365 = vstv %s1364
        %v1366 = vmul.f32 %v1365, %v1336
        %v1368 = vrot.slane %v1366, 1
        %v1370 = vadd.f32 %v1363, %v1368
        %s1371 = sld [smem:[#allocation2 + $0x41]]
        %v1372 = vstv %s1371
        %v1373 = vmul.f32 %v1372, %v1336
        %v1375 = vrot.slane %v1373, 2
        %v1377 = vadd.f32 %v1370, %v1375
        %s1378 = sld [smem:[#allocation2 + $0x43]]
        %v1379 = vstv %s1378
        %v1380 = vmul.f32 %v1379, %v1336
        %v1382 = vrot.slane %v1380, 3
        %v1384 = vadd.f32 %v1377, %v1382
        %v1386 = vrot.slane %v1384, 7
        %v1388 = vsel %vm482, %v1360, %v1386
        %v1389 = vsel %vm484, %v1388, 0.0
        %v1390 = vand.u32 %v505, 4294901760
        %1391 = vmatpush.msra.mxu0 %v1390
        %v1392 = vand.u32 %v504, 4294901760
        %1393 = vmatpush.msra.mxu0 %v1392
        %v1394 = vand.u32 %v503, 4294901760
        %1395 = vmatpush.msra.mxu0 %v1394
        %v1396 = vand.u32 %v502, 4294901760
        %1397 = vmatpush.msra.mxu0 %v1396
        %v1398 = vand.u32 %v501, 4294901760
        %1399 = vmatpush.msra.mxu0 %v1398
        %v1400 = vand.u32 %v500, 4294901760
        %1401 = vmatpush.msra.mxu0 %v1400
        %v1402 = vand.u32 %v499, 4294901760
        %1403 = vmatpush.msra.mxu0 %v1402
        %v1404 = vand.u32 %v498, 4294901760
        %1405 = vmatpush.msra.mxu0 %v1404
        %v1406 = vand.u32 %v497, 4294901760
        %1407 = vmatpush.msra.mxu0 %v1406
        %v1408 = vand.u32 %v496, 4294901760
        %1409 = vmatpush.msra.mxu0 %v1408
        %v1410 = vand.u32 %v495, 4294901760
        %1411 = vmatpush.msra.mxu0 %v1410
        %v1412 = vand.u32 %v494, 4294901760
        %1413 = vmatpush.msra.mxu0 %v1412
        %v1414 = vand.u32 %v493, 4294901760
        %1415 = vmatpush.msra.mxu0 %v1414
        %v1416 = vand.u32 %v492, 4294901760
        %1417 = vmatpush.msra.mxu0 %v1416
        %v1418 = vand.u32 %v491, 4294901760
        %1419 = vmatpush.msra.mxu0 %v1418
        %v1420 = vand.u32 %v490, 4294901760
        %1421 = vmatpush.msra.mxu0 %v1420
        %v1422 = vand.u32 %v1389, 4294901760
        %v1423 = vsub.f32 %v1389, %v1422
        %v1424 = vand.u32 %v1423, 4294901760
        %v1425 = vsub.f32 %v1423, %v1424
        %v1426 = vand.u32 %v1425, 4294901760
        %1427 = vmatmul.f32.gmra.mxu0 %v1426
        %v1428 = vpop.f32.mrf.mxu0
        %v1429 = vadd.f32 0.0, %v1428
        %1430 = vdwg.mxu0
        %v1431 = vand.u32 %v505, 4294901760
        %v1432 = vsub.f32 %v505, %v1431
        %v1433 = vand.u32 %v1432, 4294901760
        %v1434 = vsub.f32 %v1432, %v1433
        %v1435 = vand.u32 %v1434, 4294901760
        %1436 = vmatpush.msra.mxu0 %v1435
        %v1437 = vand.u32 %v504, 4294901760
        %v1438 = vsub.f32 %v504, %v1437
        %v1439 = vand.u32 %v1438, 4294901760
        %v1440 = vsub.f32 %v1438, %v1439
        %v1441 = vand.u32 %v1440, 4294901760
        %1442 = vmatpush.msra.mxu0 %v1441
        %v1443 = vand.u32 %v503, 4294901760
        %v1444 = vsub.f32 %v503, %v1443
        %v1445 = vand.u32 %v1444, 4294901760
        %v1446 = vsub.f32 %v1444, %v1445
        %v1447 = vand.u32 %v1446, 4294901760
        %1448 = vmatpush.msra.mxu0 %v1447
        %v1449 = vand.u32 %v502, 4294901760
        %v1450 = vsub.f32 %v502, %v1449
        %v1451 = vand.u32 %v1450, 4294901760
        %v1452 = vsub.f32 %v1450, %v1451
        %v1453 = vand.u32 %v1452, 4294901760
        %1454 = vmatpush.msra.mxu0 %v1453
        %v1455 = vand.u32 %v501, 4294901760
        %v1456 = vsub.f32 %v501, %v1455
        %v1457 = vand.u32 %v1456, 4294901760
        %v1458 = vsub.f32 %v1456, %v1457
        %v1459 = vand.u32 %v1458, 4294901760
        %1460 = vmatpush.msra.mxu0 %v1459
        %v1461 = vand.u32 %v500, 4294901760
        %v1462 = vsub.f32 %v500, %v1461
        %v1463 = vand.u32 %v1462, 4294901760
        %v1464 = vsub.f32 %v1462, %v1463
        %v1465 = vand.u32 %v1464, 4294901760
        %1466 = vmatpush.msra.mxu0 %v1465
        %v1467 = vand.u32 %v499, 4294901760
        %v1468 = vsub.f32 %v499, %v1467
        %v1469 = vand.u32 %v1468, 4294901760
        %v1470 = vsub.f32 %v1468, %v1469
        %v1471 = vand.u32 %v1470, 4294901760
        %1472 = vmatpush.msra.mxu0 %v1471
        %v1473 = vand.u32 %v498, 4294901760
        %v1474 = vsub.f32 %v498, %v1473
        %v1475 = vand.u32 %v1474, 4294901760
        %v1476 = vsub.f32 %v1474, %v1475
        %v1477 = vand.u32 %v1476, 4294901760
        %1478 = vmatpush.msra.mxu0 %v1477
        %v1479 = vand.u32 %v497, 4294901760
        %v1480 = vsub.f32 %v497, %v1479
        %v1481 = vand.u32 %v1480, 4294901760
        %v1482 = vsub.f32 %v1480, %v1481
        %v1483 = vand.u32 %v1482, 4294901760
        %1484 = vmatpush.msra.mxu0 %v1483
        %v1485 = vand.u32 %v496, 4294901760
        %v1486 = vsub.f32 %v496, %v1485
        %v1487 = vand.u32 %v1486, 4294901760
        %v1488 = vsub.f32 %v1486, %v1487
        %v1489 = vand.u32 %v1488, 4294901760
        %1490 = vmatpush.msra.mxu0 %v1489
        %v1491 = vand.u32 %v495, 4294901760
        %v1492 = vsub.f32 %v495, %v1491
        %v1493 = vand.u32 %v1492, 4294901760
        %v1494 = vsub.f32 %v1492, %v1493
        %v1495 = vand.u32 %v1494, 4294901760
        %1496 = vmatpush.msra.mxu0 %v1495
        %v1497 = vand.u32 %v494, 4294901760
        %v1498 = vsub.f32 %v494, %v1497
        %v1499 = vand.u32 %v1498, 4294901760
        %v1500 = vsub.f32 %v1498, %v1499
        %v1501 = vand.u32 %v1500, 4294901760
        %1502 = vmatpush.msra.mxu0 %v1501
        %v1503 = vand.u32 %v493, 4294901760
        %v1504 = vsub.f32 %v493, %v1503
        %v1505 = vand.u32 %v1504, 4294901760
        %v1506 = vsub.f32 %v1504, %v1505
        %v1507 = vand.u32 %v1506, 4294901760
        %1508 = vmatpush.msra.mxu0 %v1507
        %v1509 = vand.u32 %v492, 4294901760
        %v1510 = vsub.f32 %v492, %v1509
        %v1511 = vand.u32 %v1510, 4294901760
        %v1512 = vsub.f32 %v1510, %v1511
        %v1513 = vand.u32 %v1512, 4294901760
        %1514 = vmatpush.msra.mxu0 %v1513
        %v1515 = vand.u32 %v491, 4294901760
        %v1516 = vsub.f32 %v491, %v1515
        %v1517 = vand.u32 %v1516, 4294901760
        %v1518 = vsub.f32 %v1516, %v1517
        %v1519 = vand.u32 %v1518, 4294901760
        %1520 = vmatpush.msra.mxu0 %v1519
        %v1521 = vand.u32 %v490, 4294901760
        %v1522 = vsub.f32 %v490, %v1521
        %v1523 = vand.u32 %v1522, 4294901760
        %v1524 = vsub.f32 %v1522, %v1523
        %v1525 = vand.u32 %v1524, 4294901760
        %1526 = vmatpush.msra.mxu0 %v1525
        %v1527 = vand.u32 %v1389, 4294901760
        %1528 = vmatmul.f32.gmra.mxu0 %v1527
        %v1529 = vpop.f32.mrf.mxu0
        %v1530 = vadd.f32 %v1429, %v1529
        %1531 = vdwg.mxu0
        %v1532 = vand.u32 %v505, 4294901760
        %v1533 = vsub.f32 %v505, %v1532
        %1534 = vmatpush.msra.mxu0 %v1533
        %v1535 = vand.u32 %v504, 4294901760
        %v1536 = vsub.f32 %v504, %v1535
        %1537 = vmatpush.msra.mxu0 %v1536
        %v1538 = vand.u32 %v503, 4294901760
        %v1539 = vsub.f32 %v503, %v1538
        %1540 = vmatpush.msra.mxu0 %v1539
        %v1541 = vand.u32 %v502, 4294901760
        %v1542 = vsub.f32 %v502, %v1541
        %1543 = vmatpush.msra.mxu0 %v1542
        %v1544 = vand.u32 %v501, 4294901760
        %v1545 = vsub.f32 %v501, %v1544
        %1546 = vmatpush.msra.mxu0 %v1545
        %v1547 = vand.u32 %v500, 4294901760
        %v1548 = vsub.f32 %v500, %v1547
        %1549 = vmatpush.msra.mxu0 %v1548
        %v1550 = vand.u32 %v499, 4294901760
        %v1551 = vsub.f32 %v499, %v1550
        %1552 = vmatpush.msra.mxu0 %v1551
        %v1553 = vand.u32 %v498, 4294901760
        %v1554 = vsub.f32 %v498, %v1553
        %1555 = vmatpush.msra.mxu0 %v1554
        %v1556 = vand.u32 %v497, 4294901760
        %v1557 = vsub.f32 %v497, %v1556
        %1558 = vmatpush.msra.mxu0 %v1557
        %v1559 = vand.u32 %v496, 4294901760
        %v1560 = vsub.f32 %v496, %v1559
        %1561 = vmatpush.msra.mxu0 %v1560
        %v1562 = vand.u32 %v495, 4294901760
        %v1563 = vsub.f32 %v495, %v1562
        %1564 = vmatpush.msra.mxu0 %v1563
        %v1565 = vand.u32 %v494, 4294901760
        %v1566 = vsub.f32 %v494, %v1565
        %1567 = vmatpush.msra.mxu0 %v1566
        %v1568 = vand.u32 %v493, 4294901760
        %v1569 = vsub.f32 %v493, %v1568
        %1570 = vmatpush.msra.mxu0 %v1569
        %v1571 = vand.u32 %v492, 4294901760
        %v1572 = vsub.f32 %v492, %v1571
        %1573 = vmatpush.msra.mxu0 %v1572
        %v1574 = vand.u32 %v491, 4294901760
        %v1575 = vsub.f32 %v491, %v1574
        %1576 = vmatpush.msra.mxu0 %v1575
        %v1577 = vand.u32 %v490, 4294901760
        %v1578 = vsub.f32 %v490, %v1577
        %1579 = vmatpush.msra.mxu0 %v1578
        %v1580 = vand.u32 %v1389, 4294901760
        %v1581 = vsub.f32 %v1389, %v1580
        %1582 = vmatmul.f32.gmra.mxu0 %v1581
        %v1583 = vpop.f32.mrf.mxu0
        %v1584 = vadd.f32 %v1530, %v1583
        %1585 = vdwg.mxu0
        %v1586 = vand.u32 %v505, 4294901760
        %1587 = vmatpush.msra.mxu0 %v1586
        %v1588 = vand.u32 %v504, 4294901760
        %1589 = vmatpush.msra.mxu0 %v1588
        %v1590 = vand.u32 %v503, 4294901760
        %1591 = vmatpush.msra.mxu0 %v1590
        %v1592 = vand.u32 %v502, 4294901760
        %1593 = vmatpush.msra.mxu0 %v1592
        %v1594 = vand.u32 %v501, 4294901760
        %1595 = vmatpush.msra.mxu0 %v1594
        %v1596 = vand.u32 %v500, 4294901760
        %1597 = vmatpush.msra.mxu0 %v1596
        %v1598 = vand.u32 %v499, 4294901760
        %1599 = vmatpush.msra.mxu0 %v1598
        %v1600 = vand.u32 %v498, 4294901760
        %1601 = vmatpush.msra.mxu0 %v1600
        %v1602 = vand.u32 %v497, 4294901760
        %1603 = vmatpush.msra.mxu0 %v1602
        %v1604 = vand.u32 %v496, 4294901760
        %1605 = vmatpush.msra.mxu0 %v1604
        %v1606 = vand.u32 %v495, 4294901760
        %1607 = vmatpush.msra.mxu0 %v1606
        %v1608 = vand.u32 %v494, 4294901760
        %1609 = vmatpush.msra.mxu0 %v1608
        %v1610 = vand.u32 %v493, 4294901760
        %1611 = vmatpush.msra.mxu0 %v1610
        %v1612 = vand.u32 %v492, 4294901760
        %1613 = vmatpush.msra.mxu0 %v1612
        %v1614 = vand.u32 %v491, 4294901760
        %1615 = vmatpush.msra.mxu0 %v1614
        %v1616 = vand.u32 %v490, 4294901760
        %1617 = vmatpush.msra.mxu0 %v1616
        %v1618 = vand.u32 %v1389, 4294901760
        %v1619 = vsub.f32 %v1389, %v1618
        %v1620 = vand.u32 %v1619, 4294901760
        %1621 = vmatmul.f32.gmra.mxu0 %v1620
        %v1622 = vpop.f32.mrf.mxu0
        %v1623 = vadd.f32 %v1584, %v1622
        %1624 = vdwg.mxu0
        %v1625 = vand.u32 %v505, 4294901760
        %v1626 = vsub.f32 %v505, %v1625
        %v1627 = vand.u32 %v1626, 4294901760
        %1628 = vmatpush.msra.mxu0 %v1627
        %v1629 = vand.u32 %v504, 4294901760
        %v1630 = vsub.f32 %v504, %v1629
        %v1631 = vand.u32 %v1630, 4294901760
        %1632 = vmatpush.msra.mxu0 %v1631
        %v1633 = vand.u32 %v503, 4294901760
        %v1634 = vsub.f32 %v503, %v1633
        %v1635 = vand.u32 %v1634, 4294901760
        %1636 = vmatpush.msra.mxu0 %v1635
        %v1637 = vand.u32 %v502, 4294901760
        %v1638 = vsub.f32 %v502, %v1637
        %v1639 = vand.u32 %v1638, 4294901760
        %1640 = vmatpush.msra.mxu0 %v1639
        %v1641 = vand.u32 %v501, 4294901760
        %v1642 = vsub.f32 %v501, %v1641
        %v1643 = vand.u32 %v1642, 4294901760
        %1644 = vmatpush.msra.mxu0 %v1643
        %v1645 = vand.u32 %v500, 4294901760
        %v1646 = vsub.f32 %v500, %v1645
        %v1647 = vand.u32 %v1646, 4294901760
        %1648 = vmatpush.msra.mxu0 %v1647
        %v1649 = vand.u32 %v499, 4294901760
        %v1650 = vsub.f32 %v499, %v1649
        %v1651 = vand.u32 %v1650, 4294901760
        %1652 = vmatpush.msra.mxu0 %v1651
        %v1653 = vand.u32 %v498, 4294901760
        %v1654 = vsub.f32 %v498, %v1653
        %v1655 = vand.u32 %v1654, 4294901760
        %1656 = vmatpush.msra.mxu0 %v1655
        %v1657 = vand.u32 %v497, 4294901760
        %v1658 = vsub.f32 %v497, %v1657
        %v1659 = vand.u32 %v1658, 4294901760
        %1660 = vmatpush.msra.mxu0 %v1659
        %v1661 = vand.u32 %v496, 4294901760
        %v1662 = vsub.f32 %v496, %v1661
        %v1663 = vand.u32 %v1662, 4294901760
        %1664 = vmatpush.msra.mxu0 %v1663
        %v1665 = vand.u32 %v495, 4294901760
        %v1666 = vsub.f32 %v495, %v1665
        %v1667 = vand.u32 %v1666, 4294901760
        %1668 = vmatpush.msra.mxu0 %v1667
        %v1669 = vand.u32 %v494, 4294901760
        %v1670 = vsub.f32 %v494, %v1669
        %v1671 = vand.u32 %v1670, 4294901760
        %1672 = vmatpush.msra.mxu0 %v1671
        %v1673 = vand.u32 %v493, 4294901760
        %v1674 = vsub.f32 %v493, %v1673
        %v1675 = vand.u32 %v1674, 4294901760
        %1676 = vmatpush.msra.mxu0 %v1675
        %v1677 = vand.u32 %v492, 4294901760
        %v1678 = vsub.f32 %v492, %v1677
        %v1679 = vand.u32 %v1678, 4294901760
        %1680 = vmatpush.msra.mxu0 %v1679
        %v1681 = vand.u32 %v491, 4294901760
        %v1682 = vsub.f32 %v491, %v1681
        %v1683 = vand.u32 %v1682, 4294901760
        %1684 = vmatpush.msra.mxu0 %v1683
        %v1685 = vand.u32 %v490, 4294901760
        %v1686 = vsub.f32 %v490, %v1685
        %v1687 = vand.u32 %v1686, 4294901760
        %1688 = vmatpush.msra.mxu0 %v1687
        %v1689 = vand.u32 %v1389, 4294901760
        %1690 = vmatmul.f32.gmra.mxu0 %v1689
        %v1691 = vpop.f32.mrf.mxu0
        %v1692 = vadd.f32 %v1623, %v1691
        %1693 = vdwg.mxu0
        %v1694 = vand.u32 %v505, 4294901760
        %1695 = vmatpush.msra.mxu0 %v1694
        %v1696 = vand.u32 %v504, 4294901760
        %1697 = vmatpush.msra.mxu0 %v1696
        %v1698 = vand.u32 %v503, 4294901760
        %1699 = vmatpush.msra.mxu0 %v1698
        %v1700 = vand.u32 %v502, 4294901760
        %1701 = vmatpush.msra.mxu0 %v1700
        %v1702 = vand.u32 %v501, 4294901760
        %1703 = vmatpush.msra.mxu0 %v1702
        %v1704 = vand.u32 %v500, 4294901760
        %1705 = vmatpush.msra.mxu0 %v1704
        %v1706 = vand.u32 %v499, 4294901760
        %1707 = vmatpush.msra.mxu0 %v1706
        %v1708 = vand.u32 %v498, 4294901760
        %1709 = vmatpush.msra.mxu0 %v1708
        %v1710 = vand.u32 %v497, 4294901760
        %1711 = vmatpush.msra.mxu0 %v1710
        %v1712 = vand.u32 %v496, 4294901760
        %1713 = vmatpush.msra.mxu0 %v1712
        %v1714 = vand.u32 %v495, 4294901760
        %1715 = vmatpush.msra.mxu0 %v1714
        %v1716 = vand.u32 %v494, 4294901760
        %1717 = vmatpush.msra.mxu0 %v1716
        %v1718 = vand.u32 %v493, 4294901760
        %1719 = vmatpush.msra.mxu0 %v1718
        %v1720 = vand.u32 %v492, 4294901760
        %1721 = vmatpush.msra.mxu0 %v1720
        %v1722 = vand.u32 %v491, 4294901760
        %1723 = vmatpush.msra.mxu0 %v1722
        %v1724 = vand.u32 %v490, 4294901760
        %1725 = vmatpush.msra.mxu0 %v1724
        %v1726 = vand.u32 %v1389, 4294901760
        %1727 = vmatmul.f32.gmra.mxu0 %v1726
        %v1728 = vpop.f32.mrf.mxu0
        %v1729 = vadd.f32 %v1692, %v1728
        %1730 = vdwg.mxu0
        %s1731 = sld [smem:[#allocation2 + $0x44]]
        %v1732 = vstv %s1731
        %v1733 = vadd.f32 %v1729, %v1732
        %s1734 = sld [smem:[#allocation2 + $0x45]]
        %v1735 = vstv %s1734
        %v1736 = vadd.f32 %v1729, %v1735
        %v1737 = vsel %vm482, %v1733, %v1736
        %v1738 = vsel %vm484, %v1737, 0.0
        %1739 = vst [vmem:[%s246] sm:$0xff] %v1738
        %s1740 = sand.u32 %s105, 1
        %s1741 = scalar_lea.sflag [#allocation4], %s1740
        %s1742 = sand.u32 %s105, 1
        %s1743 = smul.addr %s1742, 8
        %s1744 = scalar_lea.vmem [#allocation9], %s1743
        // Predicated region
        $region45: #{tpu_custom_call.1} parent=31 // pred_check
          %p1745 = pneg %p115
        $region46: #{tpu_custom_call.1} parent=31 // pred_check_branch
          %1747 = sbr.rel (%p1745) target = $region48
        $region47: #{tpu_custom_call.1} parent=31 // pred_region
          %1749 = vsyncadd %s1741, 0
          %s1750 = smul.addr %s24, 8
          %s1751 = scalar_lea.hbm %s3, %s1750
          %s1753 = sshll.u32 %s1744, 4
          %s1754 = int_to_ptr.vmem [resolvable:$true] %s1753
          %s1755 = sshll.u32 %s1751, 4
          %s1756 = int_to_ptr.hbm [resolvable:$true] %s1755
          %1758 = dma.vmem_to_hbm [thread:$0]  %s1754, 128, %s1756, %s1741
        $region48: #{tpu_custom_call.1} parent=31 // pred_fallthru
          _
      $region32: #{tpu_custom_call.1} parent=5 // pred_fallthru
        _
      %p1759 = scmp.le.s32.totalorder 2, %s19
      // Predicated region
      $region49: #{tpu_custom_call.1} parent=5 // pred_check
        %p1760 = pneg %p1759
      $region50: #{tpu_custom_call.1} parent=5 // pred_check_branch
        %1762 = sbr.rel (%p1760) target = $region52
      $region51: #{tpu_custom_call.1} parent=5 // pred_region
        %s1763 = ssub.s32 %s19, 2
        // Predicated region
        $region53: #{tpu_custom_call.1} parent=51 // pred_check
          %p1764 = pneg %p121
        $region54: #{tpu_custom_call.1} parent=51 // pred_check_branch
          %1766 = sbr.rel (%p1764) target = $region56
        $region55: #{tpu_custom_call.1} parent=51 // pred_region
          %s1767 = sand.u32 %s106, 1
          %s1768 = scalar_lea.sflag [#allocation4], %s1767
          %s1769 = sand.u32 %s106, 1
          %s1770 = smul.addr %s1769, 8
          %s1771 = scalar_lea.vmem [#allocation9], %s1770
          %1773 = dma.done %s1768, 128
        $region56: #{tpu_custom_call.1} parent=51 // pred_fallthru
          _
      $region52: #{tpu_custom_call.1} parent=5 // pred_fallthru
        _
    $region6: #{tpu_custom_call.1} parent=1 // loop_footer
      %s23 = sadd.s32 1, %s19
    $region7: #{tpu_custom_call.1} parent=1 // loop_footer_branch
      %18 = sbr.rel target = $region3
    $region8: #{tpu_custom_call.1} parent=1 // loop_exit
      _
    %1774 = vsyncpa [#allocation3], 1
    %s1775 = scalar_lea.sflag [#allocation3], 1
    %1776 = vsyncpa %s1775, 1
    %1777 = vsyncpa [#allocation8], 1
    %s1778 = scalar_lea.sflag [#allocation8], 1
    %1779 = vsyncpa %s1778, 1
    %1780 = vsyncpa [#allocation4], 1
    %s1781 = scalar_lea.sflag [#allocation4], 1
    %1782 = vsyncpa %s1781, 1
    %1783 = vsyncpa [#allocation5], 1
    %s1784 = scalar_lea.sflag [#allocation5], 1
    %1785 = vsyncpa %s1784, 1

</llo_original>
